<compile_context>
chip_gen: v7x
topology: tpu7x:2x2x1
jax: 0.10.0
libtpu: 0.0.40
codegen_flags: <defaults>
</compile_context>

<pallas_src>
import functools
import math

import jax
import jax.numpy as jnp
from jax.experimental import pallas as pl
from jax.experimental.pallas import tpu as pltpu

EPS = 1e-5  # PyTorch LayerNorm default eps


def _ln_normalize(x):
    """Pure LayerNorm normalize (affine folded into downstream weights)."""
    mu = jnp.mean(x, axis=-1, keepdims=True)
    xc = x - mu
    var = jnp.mean(xc * xc, axis=-1, keepdims=True)
    return xc * jax.lax.rsqrt(var + EPS)


# ---------------------------------------------------------------------------
# Fused encoder kernel: grid = (batch_blocks, layer)
# ---------------------------------------------------------------------------
def vit_kernel(nhead,
               p_ref, pw_ref, pb_ref, pos_ref,
               wqkv_ref, bqkv_ref, wo_ref, bo_ref,
               w1_ref, b1_ref, w2_ref, b2_ref,
               gF_ref, bF_ref,
               o_ref):
    layer = pl.program_id(1)
    n_layers = pl.num_programs(1)
    Bb, N, D = o_ref.shape
    K = p_ref.shape[-1]
    hd = D // nhead
    M = Bb * N  # matmul M dimension: tokens of all Bb images in this block

    # ---- patch embedding + positional embedding (first layer step only) ----
    @pl.when(layer == 0)
    def _embed():
        p = p_ref[...].reshape(M, K)                             # bf16 [M, K]
        y = jnp.dot(p, pw_ref[...], preferred_element_type=jnp.float32)
        y = y.reshape(Bb, N, D) + pb_ref[...] + pos_ref[...]
        o_ref[...] = y

    # Token activations stay resident in the (revisited) output block across
    # the layer axis; flatten batch+tokens for all projection matmuls.
    x = o_ref[...].reshape(M, D)                                 # f32 [M, D]

    # ---- attention sub-block (pre-LN; LN affine + q-scale folded offline) ----
    h = _ln_normalize(x).astype(jnp.bfloat16)
    qkv = jnp.dot(h, wqkv_ref[0], preferred_element_type=jnp.float32)
    qkv = (qkv + bqkv_ref[0]).astype(jnp.bfloat16)               # [M, 3D]

    def to_heads(t):  # [M, hd*nhead] slice-of-qkv -> [nhead*Bb, N, hd]
        parts = [t[:, i * hd:(i + 1) * hd].reshape(Bb, N, hd)
                 for i in range(nhead)]
        return jnp.concatenate(parts, axis=0)                    # major-dim concat

    qh = to_heads(qkv[:, :D])          # q columns already scaled by 1/sqrt(hd)
    kh = to_heads(qkv[:, D:2 * D])
    vh = to_heads(qkv[:, 2 * D:])

    # Single batched attention over (nhead*Bb): one softmax chain, not nhead.
    s = jnp.einsum('bqd,bkd->bqk', qh, kh,
                   preferred_element_type=jnp.float32)           # [HB, N, N]
    s = s - jnp.max(s, axis=-1, keepdims=True)
    e = jnp.exp(s)
    inv = pl.reciprocal(jnp.sum(e, axis=-1, keepdims=True), approx=True)
    pr = (e * inv).astype(jnp.bfloat16)
    ctx = jnp.einsum('bqk,bkd->bqd', pr, vh,
                     preferred_element_type=jnp.float32)         # [HB, N, hd]
    ctx = ctx.astype(jnp.bfloat16).reshape(nhead, M, hd)
    # One lane-concat per layer to restore [M, D], then one full-D projection.
    ctx = jnp.concatenate([ctx[i] for i in range(nhead)], axis=-1)
    attn = jnp.dot(ctx, wo_ref[0], preferred_element_type=jnp.float32)
    x = x + attn + bo_ref[0]            # residual (dropout = identity in eval)

    # ---- feed-forward sub-block (pre-LN, LN2 affine folded into W1) ----
    h2 = _ln_normalize(x).astype(jnp.bfloat16)
    f = jnp.dot(h2, w1_ref[0], preferred_element_type=jnp.float32) + b1_ref[0]
    f = 0.5 * f * (1.0 + jax.lax.erf(f * 0.7071067811865476))    # exact GELU
    f = jnp.dot(f.astype(jnp.bfloat16), w2_ref[0],
                preferred_element_type=jnp.float32) + b2_ref[0]
    x = x + f

    # ---- write-back: carry activations, or final LayerNorm on last layer ----
    @pl.when(layer < n_layers - 1)
    def _carry():
        o_ref[...] = x.reshape(Bb, N, D)

    @pl.when(layer == n_layers - 1)
    def _final():
        xn = _ln_normalize(x) * gF_ref[...] + bF_ref[...]
        o_ref[...] = xn.reshape(Bb, N, D)


# ---------------------------------------------------------------------------
# Wrapper: im2col reshape + single fused pallas_call with batch blocking
# ---------------------------------------------------------------------------
def vit_encoder_forward(x, params, batch_block=None):
    B, C, H, W = x.shape
    P = params["patch_size"]
    D = params["embed_dim"]
    FF = params["ff_dim"]
    L = params["num_layers"]
    nhead = params["nhead"]
    Hn, Wn = H // P, W // P
    N = Hn * Wn
    K = C * P * P
    # TODO(synk): if N is not a multiple of 8 (e.g. 196), pad tokens to the
    # next multiple of 128 and mask padded score columns; both toy (16) and
    # module-default (64) configs are already aligned.
    assert N % 8 == 0, "token count must be sublane-aligned"

    # Batch block: amortize per-layer weight DMA over Bb images.
    if batch_block is None:
        batch_block = min(B, 8)
        while B % batch_block:
            batch_block -= 1
    Bb = batch_block
    assert B % Bb == 0

    # im2col: NCHW -> [B, N, C*P*P]; patch feature ordering (c, ph, pw) matches
    # torch Conv2d weight flattening; token ordering matches
    # flatten(2).transpose(1,2).  Stored bf16 (cast to bf16 for the MXU anyway).
    patches = x.reshape(B, C, Hn, P, Wn, P)
    patches = patches.transpose(0, 2, 4, 1, 3, 5).reshape(B, N, K)
    patches = patches.astype(jnp.bfloat16)

    const2 = lambda bi, l: (0, 0)
    batch3 = lambda bi, l: (bi, 0, 0)
    per_layer = lambda bi, l: (l, 0, 0)

    # NOTE: for production-size ViT on v7x (64 MiB VMEM), additionally chunk
    # the FF weights along the FF axis (or store projection weights in fp8)
    # and re-derive this VMEM budget; the toy config fits trivially.
    out = pl.pallas_call(
        functools.partial(vit_kernel, nhead),
        out_shape=jax.ShapeDtypeStruct((B, N, D), jnp.float32),
        grid=(B // Bb, L),
        in_specs=[
            pl.BlockSpec((Bb, N, K), batch3),         # im2col patches (bf16)
            pl.BlockSpec((K, D), const2),             # patch proj weight (bf16)
            pl.BlockSpec((1, D), const2),             # patch proj bias
            pl.BlockSpec((N, D), const2),             # positional embedding
            pl.BlockSpec((1, D, 3 * D), per_layer),   # fused QKV weight (bf16)
            pl.BlockSpec((1, 1, 3 * D), per_layer),   # fused QKV bias
            pl.BlockSpec((1, D, D), per_layer),       # out-proj weight (bf16)
            pl.BlockSpec((1, 1, D), per_layer),       # out-proj bias
            pl.BlockSpec((1, D, FF), per_layer),      # FF w1 (bf16)
            pl.BlockSpec((1, 1, FF), per_layer),      # FF b1
            pl.BlockSpec((1, FF, D), per_layer),      # FF w2 (bf16)
            pl.BlockSpec((1, 1, D), per_layer),       # FF b2
            pl.BlockSpec((1, D), const2),             # final LN gamma
            pl.BlockSpec((1, D), const2),             # final LN beta
        ],
        out_specs=pl.BlockSpec((Bb, N, D), batch3),   # resident across layers
        compiler_params=pltpu.CompilerParams(
            dimension_semantics=("parallel", "arbitrary"),
            vmem_limit_bytes=48 * 1024 * 1024),
    )(patches,
      params["patch_w"], params["patch_b"], params["pos_embed"],
      params["wqkv"], params["bqkv"], params["wo"], params["bo"],
      params["w1"], params["b1"], params["w2"], params["b2"],
      params["norm_g"], params["norm_b"])
    return out


# ---------------------------------------------------------------------------
# Deterministic parameter initialization (synthetic, shapes match the module).
# LN affines and the 1/sqrt(head_dim) attention scale are folded into the
# projection weights here (offline), so the kernel LN is a pure normalize.
# ---------------------------------------------------------------------------
def init_params(key, img_size, patch_size, in_chans, embed_dim,
                num_layers, nhead, ff_dim):
    N = (img_size // patch_size) ** 2
    K = in_chans * patch_size * patch_size
    hd = embed_dim // nhead
    scale = 1.0 / math.sqrt(hd)
    keys = jax.random.split(key, 3 + num_layers)

    def nrm(k, shape, s=0.02):
        return jax.random.normal(k, shape, jnp.float32) * s

    params = dict(patch_size=patch_size, embed_dim=embed_dim, nhead=nhead,
                  ff_dim=ff_dim, num_layers=num_layers)

    # Conv2d weight [D, C, P, P] -> flattened & transposed so patches @ W works
    w_conv = nrm(keys[0], (embed_dim, in_chans, patch_size, patch_size))
    params["patch_w"] = w_conv.reshape(embed_dim, K).T.astype(jnp.bfloat16)
    params["patch_b"] = nrm(keys[1], (1, embed_dim))
    params["pos_embed"] = nrm(keys[2], (N, embed_dim))    # torch: randn * 0.02
    params["norm_g"] = jnp.ones((1, embed_dim), jnp.float32)
    params["norm_b"] = jnp.zeros((1, embed_dim), jnp.float32)

    wqkv_l, bqkv_l, wo_l, bo_l = [], [], [], []
    w1_l, b1_l, w2_l, b2_l = [], [], [], []
    for li in range(num_layers):
        lk = jax.random.split(keys[3 + li], 8)
        in_proj_w = nrm(lk[0], (3 * embed_dim, embed_dim))  # torch in_proj_weight
        in_proj_b = nrm(lk[1], (3 * embed_dim,))
        wqkv = in_proj_w.T                                  # [D, 3D]
        bqkv = in_proj_b                                    # [3D]
        wo = nrm(lk[2], (embed_dim, embed_dim)).T           # out_proj.weight.T
        bo = nrm(lk[3], (1, embed_dim))
        w1 = nrm(lk[4], (ff_dim, embed_dim)).T              # ff[0].weight.T
        b1 = nrm(lk[5], (ff_dim,))
        w2 = nrm(lk[6], (embed_dim, ff_dim)).T              # ff[3].weight.T
        b2 = nrm(lk[7], (1, embed_dim))
        g1 = jnp.ones((embed_dim,), jnp.float32)            # ln1 weight/bias
        be1 = jnp.zeros((embed_dim,), jnp.float32)
        g2 = jnp.ones((embed_dim,), jnp.float32)            # ln2 weight/bias
        be2 = jnp.zeros((embed_dim,), jnp.float32)

        # Fold LN1 affine into fused QKV: (norm(x)*g+b)@W + c == norm(x)@(g*W) + (b@W + c)
        wqkv_f = wqkv * g1[:, None]
        bqkv_f = be1 @ wqkv + bqkv
        # Fold attention scale 1/sqrt(head_dim) into the Q projection only.
        wqkv_f = wqkv_f.at[:, :embed_dim].multiply(scale)
        bqkv_f = bqkv_f.at[:embed_dim].multiply(scale)
        # Fold LN2 affine into FF first linear.
        w1_f = w1 * g2[:, None]
        b1_f = be2 @ w1 + b1

        wqkv_l.append(wqkv_f.astype(jnp.bfloat16))
        bqkv_l.append(bqkv_f.reshape(1, 3 * embed_dim))
        wo_l.append(wo.astype(jnp.bfloat16))
        bo_l.append(bo)
        w1_l.append(w1_f.astype(jnp.bfloat16))
        b1_l.append(b1_f.reshape(1, ff_dim))
        w2_l.append(w2.astype(jnp.bfloat16))
        b2_l.append(b2)

    params["wqkv"] = jnp.stack(wqkv_l)   # [L, D, 3D] bf16
    params["bqkv"] = jnp.stack(bqkv_l)   # [L, 1, 3D] f32
    params["wo"] = jnp.stack(wo_l)       # [L, D, D]  bf16
    params["bo"] = jnp.stack(bo_l)       # [L, 1, D]  f32
    params["w1"] = jnp.stack(w1_l)       # [L, D, FF] bf16
    params["b1"] = jnp.stack(b1_l)       # [L, 1, FF] f32
    params["w2"] = jnp.stack(w2_l)       # [L, FF, D] bf16
    params["b2"] = jnp.stack(b2_l)       # [L, 1, D]  f32
    return params


if __name__ == "__main__":
    # Small shapes consistent with the module: batch=2, in_chans=3, img=16,
    # patch=4 -> 16 tokens, embed_dim=32, 2 layers, 4 heads, ff_dim=64.
    key = jax.random.PRNGKey(0)
    kx, kp = jax.random.split(key)
    B, C, IMG, PATCH = 2, 3, 16, 4
    EMBED, LAYERS, NHEAD, FF = 32, 2, 4, 64

    x = jax.random.normal(kx, (B, C, IMG, IMG), jnp.float32)
    params = init_params(kp, img_size=IMG, patch_size=PATCH, in_chans=C,
                         embed_dim=EMBED, num_layers=LAYERS, nhead=NHEAD,
                         ff_dim=FF)

    out = vit_encoder_forward(x, params)
    jax.block_until_ready(out)
    assert out.shape == (B, (IMG // PATCH) ** 2, EMBED), out.shape
    assert bool(jnp.all(jnp.isfinite(out)))
    # TODO(synk): dropout is treated as identity (eval-mode semantics); train-mode
    # stochastic dropout masks are not implemented.
    print("KERNEL_OK")
</pallas_src>

<mosaic_0001>
module attributes {stable_mosaic.version = 11 : i64} {
  func.func @vit_kernel(%arg0: i32, %arg1: i32, %arg2: memref<2x16x48xbf16, #tpu.memory_space<vmem>>, %arg3: memref<48x32xbf16, #tpu.memory_space<vmem>>, %arg4: memref<1x32xf32, #tpu.memory_space<vmem>>, %arg5: memref<16x32xf32, #tpu.memory_space<vmem>>, %arg6: memref<1x32x96xbf16, #tpu.memory_space<vmem>>, %arg7: memref<1x1x96xf32, #tpu.memory_space<vmem>>, %arg8: memref<1x32x32xbf16, #tpu.memory_space<vmem>>, %arg9: memref<1x1x32xf32, #tpu.memory_space<vmem>>, %arg10: memref<1x32x64xbf16, #tpu.memory_space<vmem>>, %arg11: memref<1x1x64xf32, #tpu.memory_space<vmem>>, %arg12: memref<1x64x32xbf16, #tpu.memory_space<vmem>>, %arg13: memref<1x1x32xf32, #tpu.memory_space<vmem>>, %arg14: memref<1x32xf32, #tpu.memory_space<vmem>>, %arg15: memref<1x32xf32, #tpu.memory_space<vmem>>, %arg16: memref<2x16x32xf32, #tpu.memory_space<vmem>>) attributes {dimension_semantics = [#tpu.dimension_semantics<parallel>, #tpu.dimension_semantics<arbitrary>], iteration_bounds = array<i64: 1, 2>, scalar_prefetch = 0 : i64, scratch_operands = 0 : i64, tpu.core_type = #tpu.core_type<tc>, window_params = [{transform_indices = @transform_0, window_bounds = array<i64: 2, 16, 48>}, {pipeline_mode = #tpu.pipeline_mode<synchronous>, transform_indices = @transform_1, window_bounds = array<i64: 48, 32>}, {pipeline_mode = #tpu.pipeline_mode<synchronous>, transform_indices = @transform_2, window_bounds = array<i64: 1, 32>}, {pipeline_mode = #tpu.pipeline_mode<synchronous>, transform_indices = @transform_3, window_bounds = array<i64: 16, 32>}, {transform_indices = @transform_4, window_bounds = array<i64: 1, 32, 96>}, {transform_indices = @transform_5, window_bounds = array<i64: 1, 1, 96>}, {transform_indices = @transform_6, window_bounds = array<i64: 1, 32, 32>}, {transform_indices = @transform_7, window_bounds = array<i64: 1, 1, 32>}, {transform_indices = @transform_8, window_bounds = array<i64: 1, 32, 64>}, {transform_indices = @transform_9, window_bounds = array<i64: 1, 1, 64>}, {transform_indices = @transform_10, window_bounds = array<i64: 1, 64, 32>}, {transform_indices = @transform_11, window_bounds = array<i64: 1, 1, 32>}, {pipeline_mode = #tpu.pipeline_mode<synchronous>, transform_indices = @transform_12, window_bounds = array<i64: 1, 32>}, {pipeline_mode = #tpu.pipeline_mode<synchronous>, transform_indices = @transform_13, window_bounds = array<i64: 1, 32>}, {transform_indices = @transform_14, window_bounds = array<i64: 2, 16, 32>}]} {
    %c0_i32 = arith.constant 0 : i32
    %0 = arith.cmpi eq, %arg1, %c0_i32 : i32
    %1 = arith.extui %0 : i1 to i32
    %c0_i32_0 = arith.constant 0 : i32
    %2 = arith.cmpi ne, %1, %c0_i32_0 : i32
    scf.if %2 {
      %c0_50 = arith.constant 0 : index
      %c0_51 = arith.constant 0 : index
      %c0_52 = arith.constant 0 : index
      %139 = vector.load %arg2[%c0_50, %c0_51, %c0_52] : memref<2x16x48xbf16, #tpu.memory_space<vmem>>, vector<2x16x48xbf16>
      %140 = vector.shape_cast %139 : vector<2x16x48xbf16> to vector<32x48xbf16>
      %c0_53 = arith.constant 0 : index
      %c0_54 = arith.constant 0 : index
      %141 = vector.load %arg3[%c0_53, %c0_54] : memref<48x32xbf16, #tpu.memory_space<vmem>>, vector<48x32xbf16>
      %cst_55 = arith.constant dense<0.000000e+00> : vector<32x32xf32>
      %142 = tpu.matmul %140, %141, %cst_55 {dimension_numbers = #tpu.dot_dimension_numbers<[1], [0], [0], [1], [0, 0, 1, 1], [], []>} : vector<32x48xbf16>, vector<48x32xbf16>, vector<32x32xf32> -> vector<32x32xf32>
      %143 = vector.shape_cast %142 : vector<32x32xf32> to vector<2x16x32xf32>
      %c0_56 = arith.constant 0 : index
      %c0_57 = arith.constant 0 : index
      %144 = vector.load %arg4[%c0_56, %c0_57] : memref<1x32xf32, #tpu.memory_space<vmem>>, vector<1x32xf32>
      %145 = vector.shape_cast %144 : vector<1x32xf32> to vector<1x1x32xf32>
      %146 = vector.broadcast %145 : vector<1x1x32xf32> to vector<2x16x32xf32>
      %147 = arith.addf %143, %146 : vector<2x16x32xf32>
      %c0_58 = arith.constant 0 : index
      %c0_59 = arith.constant 0 : index
      %148 = vector.load %arg5[%c0_58, %c0_59] : memref<16x32xf32, #tpu.memory_space<vmem>>, vector<16x32xf32>
      %149 = vector.shape_cast %148 : vector<16x32xf32> to vector<1x16x32xf32>
      %150 = vector.broadcast %149 : vector<1x16x32xf32> to vector<2x16x32xf32>
      %151 = arith.addf %147, %150 : vector<2x16x32xf32>
      %c0_60 = arith.constant 0 : index
      %c0_61 = arith.constant 0 : index
      %c0_62 = arith.constant 0 : index
      %152 = vector.load %arg16[%c0_60, %c0_61, %c0_62] : memref<2x16x32xf32, #tpu.memory_space<vmem>>, vector<2x16x32xf32>
      tpu.vector_store %arg16[%c0_60, %c0_61, %c0_62], %151 {strides = array<i32>} : memref<2x16x32xf32, #tpu.memory_space<vmem>>, vector<2x16x32xf32>,
    } else {
    }
    %c0 = arith.constant 0 : index
    %c0_1 = arith.constant 0 : index
    %c0_2 = arith.constant 0 : index
    %3 = vector.load %arg16[%c0, %c0_1, %c0_2] : memref<2x16x32xf32, #tpu.memory_space<vmem>>, vector<2x16x32xf32>
    %4 = vector.shape_cast %3 : vector<2x16x32xf32> to vector<32x32xf32>
    %cst = arith.constant dense<0.000000e+00> : vector<32xf32>
    %5 = vector.multi_reduction <add>, %4, %cst [1] : vector<32x32xf32> to vector<32xf32>
    %6 = vector.shape_cast %5 : vector<32xf32> to vector<32x1xf32>
    %cst_3 = arith.constant 3.200000e+01 : f32
    %7 = vector.broadcast %cst_3 : f32 to vector<32x1xf32>
    %8 = arith.divf %6, %7 : vector<32x1xf32>
    %9 = vector.broadcast %8 : vector<32x1xf32> to vector<32x32xf32>
    %10 = arith.subf %4, %9 : vector<32x32xf32>
    %11 = arith.mulf %10, %10 : vector<32x32xf32>
    %cst_4 = arith.constant dense<0.000000e+00> : vector<32xf32>
    %12 = vector.multi_reduction <add>, %11, %cst_4 [1] : vector<32x32xf32> to vector<32xf32>
    %13 = vector.shape_cast %12 : vector<32xf32> to vector<32x1xf32>
    %cst_5 = arith.constant 3.200000e+01 : f32
    %14 = vector.broadcast %cst_5 : f32 to vector<32x1xf32>
    %15 = arith.divf %13, %14 : vector<32x1xf32>
    %cst_6 = arith.constant 9.99999974E-6 : f32
    %16 = vector.broadcast %cst_6 : f32 to vector<32x1xf32>
    %17 = arith.addf %15, %16 : vector<32x1xf32>
    %18 = math.rsqrt %17 : vector<32x1xf32>
    %19 = vector.broadcast %18 : vector<32x1xf32> to vector<32x32xf32>
    %20 = arith.mulf %10, %19 : vector<32x32xf32>
    %21 = arith.truncf %20 : vector<32x32xf32> to vector<32x32xbf16>
    %c0_7 = arith.constant 0 : index
    %c0_8 = arith.constant 0 : index
    %c0_9 = arith.constant 0 : index
    %22 = vector.load %arg6[%c0_7, %c0_8, %c0_9] : memref<1x32x96xbf16, #tpu.memory_space<vmem>>, vector<1x32x96xbf16>
    %23 = vector.shape_cast %22 : vector<1x32x96xbf16> to vector<32x96xbf16>
    %cst_10 = arith.constant dense<0.000000e+00> : vector<32x96xf32>
    %24 = tpu.matmul %21, %23, %cst_10 {dimension_numbers = #tpu.dot_dimension_numbers<[1], [0], [0], [1], [0, 0, 1, 1], [], []>} : vector<32x32xbf16>, vector<32x96xbf16>, vector<32x96xf32> -> vector<32x96xf32>
    %c0_11 = arith.constant 0 : index
    %c0_12 = arith.constant 0 : index
    %c0_13 = arith.constant 0 : index
    %25 = vector.load %arg7[%c0_11, %c0_12, %c0_13] : memref<1x1x96xf32, #tpu.memory_space<vmem>>, vector<1x1x96xf32>
    %26 = vector.shape_cast %25 : vector<1x1x96xf32> to vector<1x96xf32>
    %27 = vector.broadcast %26 : vector<1x96xf32> to vector<32x96xf32>
    %28 = arith.addf %24, %27 : vector<32x96xf32>
    %29 = arith.truncf %28 : vector<32x96xf32> to vector<32x96xbf16>
    %30 = vector.extract_strided_slice %29 {offsets = [0, 0], sizes = [32, 32], strides = [1, 1]} : vector<32x96xbf16> to vector<32x32xbf16>
    %31 = vector.extract_strided_slice %30 {offsets = [0, 0], sizes = [32, 8], strides = [1, 1]} : vector<32x32xbf16> to vector<32x8xbf16>
    %32 = vector.shape_cast %31 : vector<32x8xbf16> to vector<2x16x8xbf16>
    %33 = vector.extract_strided_slice %30 {offsets = [0, 8], sizes = [32, 8], strides = [1, 1]} : vector<32x32xbf16> to vector<32x8xbf16>
    %34 = vector.shape_cast %33 : vector<32x8xbf16> to vector<2x16x8xbf16>
    %35 = vector.extract_strided_slice %30 {offsets = [0, 16], sizes = [32, 8], strides = [1, 1]} : vector<32x32xbf16> to vector<32x8xbf16>
    %36 = vector.shape_cast %35 : vector<32x8xbf16> to vector<2x16x8xbf16>
    %37 = vector.extract_strided_slice %30 {offsets = [0, 24], sizes = [32, 8], strides = [1, 1]} : vector<32x32xbf16> to vector<32x8xbf16>
    %38 = vector.shape_cast %37 : vector<32x8xbf16> to vector<2x16x8xbf16>
    %39 = tpu.concatenate %32, %34, %36, %38 in 0 : vector<2x16x8xbf16>, vector<2x16x8xbf16>, vector<2x16x8xbf16>, vector<2x16x8xbf16> -> vector<8x16x8xbf16>
    %40 = vector.extract_strided_slice %29 {offsets = [0, 32], sizes = [32, 32], strides = [1, 1]} : vector<32x96xbf16> to vector<32x32xbf16>
    %41 = vector.extract_strided_slice %40 {offsets = [0, 0], sizes = [32, 8], strides = [1, 1]} : vector<32x32xbf16> to vector<32x8xbf16>
    %42 = vector.shape_cast %41 : vector<32x8xbf16> to vector<2x16x8xbf16>
    %43 = vector.extract_strided_slice %40 {offsets = [0, 8], sizes = [32, 8], strides = [1, 1]} : vector<32x32xbf16> to vector<32x8xbf16>
    %44 = vector.shape_cast %43 : vector<32x8xbf16> to vector<2x16x8xbf16>
    %45 = vector.extract_strided_slice %40 {offsets = [0, 16], sizes = [32, 8], strides = [1, 1]} : vector<32x32xbf16> to vector<32x8xbf16>
    %46 = vector.shape_cast %45 : vector<32x8xbf16> to vector<2x16x8xbf16>
    %47 = vector.extract_strided_slice %40 {offsets = [0, 24], sizes = [32, 8], strides = [1, 1]} : vector<32x32xbf16> to vector<32x8xbf16>
    %48 = vector.shape_cast %47 : vector<32x8xbf16> to vector<2x16x8xbf16>
    %49 = tpu.concatenate %42, %44, %46, %48 in 0 : vector<2x16x8xbf16>, vector<2x16x8xbf16>, vector<2x16x8xbf16>, vector<2x16x8xbf16> -> vector<8x16x8xbf16>
    %50 = vector.extract_strided_slice %29 {offsets = [0, 64], sizes = [32, 32], strides = [1, 1]} : vector<32x96xbf16> to vector<32x32xbf16>
    %51 = vector.extract_strided_slice %50 {offsets = [0, 0], sizes = [32, 8], strides = [1, 1]} : vector<32x32xbf16> to vector<32x8xbf16>
    %52 = vector.shape_cast %51 : vector<32x8xbf16> to vector<2x16x8xbf16>
    %53 = vector.extract_strided_slice %50 {offsets = [0, 8], sizes = [32, 8], strides = [1, 1]} : vector<32x32xbf16> to vector<32x8xbf16>
    %54 = vector.shape_cast %53 : vector<32x8xbf16> to vector<2x16x8xbf16>
    %55 = vector.extract_strided_slice %50 {offsets = [0, 16], sizes = [32, 8], strides = [1, 1]} : vector<32x32xbf16> to vector<32x8xbf16>
    %56 = vector.shape_cast %55 : vector<32x8xbf16> to vector<2x16x8xbf16>
    %57 = vector.extract_strided_slice %50 {offsets = [0, 24], sizes = [32, 8], strides = [1, 1]} : vector<32x32xbf16> to vector<32x8xbf16>
    %58 = vector.shape_cast %57 : vector<32x8xbf16> to vector<2x16x8xbf16>
    %59 = tpu.concatenate %52, %54, %56, %58 in 0 : vector<2x16x8xbf16>, vector<2x16x8xbf16>, vector<2x16x8xbf16>, vector<2x16x8xbf16> -> vector<8x16x8xbf16>
    "tpu.trace_start"() <{level = 10 : i32, message = "bqd,bkd->bqk"}> : () -> ()
    %cst_14 = arith.constant dense<0.000000e+00> : vector<8x16x16xf32>
    %60 = tpu.matmul %39, %49, %cst_14 {dimension_numbers = #tpu.dot_dimension_numbers<[2], [2], [1], [1], [0, 0, 0, 1, 1, 1], [0], [0]>} : vector<8x16x8xbf16>, vector<8x16x8xbf16>, vector<8x16x16xf32> -> vector<8x16x16xf32>
    "tpu.trace_stop"() : () -> ()
    %cst_15 = arith.constant dense<0xFF800000> : vector<8x16xf32>
    %61 = vector.multi_reduction <maximumf>, %60, %cst_15 [2] : vector<8x16x16xf32> to vector<8x16xf32>
    %62 = vector.shape_cast %61 : vector<8x16xf32> to vector<8x16x1xf32>
    %63 = vector.broadcast %62 : vector<8x16x1xf32> to vector<8x16x16xf32>
    %64 = arith.subf %60, %63 : vector<8x16x16xf32>
    %65 = math.exp %64 : vector<8x16x16xf32>
    %cst_16 = arith.constant dense<0.000000e+00> : vector<8x16xf32>
    %66 = vector.multi_reduction <add>, %65, %cst_16 [2] : vector<8x16x16xf32> to vector<8x16xf32>
    %67 = vector.shape_cast %66 : vector<8x16xf32> to vector<8x16x1xf32>
    %68 = tpu.reciprocal %67 {approx = true} : vector<8x16x1xf32> -> vector<8x16x1xf32>
    %69 = vector.broadcast %68 : vector<8x16x1xf32> to vector<8x16x16xf32>
    %70 = arith.mulf %65, %69 : vector<8x16x16xf32>
    %71 = arith.truncf %70 : vector<8x16x16xf32> to vector<8x16x16xbf16>
    "tpu.trace_start"() <{level = 10 : i32, message = "bqk,bkd->bqd"}> : () -> ()
    %cst_17 = arith.constant dense<0.000000e+00> : vector<8x16x8xf32>
    %72 = tpu.matmul %71, %59, %cst_17 {dimension_numbers = #tpu.dot_dimension_numbers<[2], [1], [1], [2], [0, 0, 0, 1, 1, 2], [0], [0]>} : vector<8x16x16xbf16>, vector<8x16x8xbf16>, vector<8x16x8xf32> -> vector<8x16x8xf32>
    "tpu.trace_stop"() : () -> ()
    %73 = arith.truncf %72 : vector<8x16x8xf32> to vector<8x16x8xbf16>
    %74 = vector.shape_cast %73 : vector<8x16x8xbf16> to vector<4x32x8xbf16>
    %75 = vector.extract_strided_slice %74 {offsets = [0, 0, 0], sizes = [1, 32, 8], strides = [1, 1, 1]} : vector<4x32x8xbf16> to vector<1x32x8xbf16>
    %76 = vector.shape_cast %75 : vector<1x32x8xbf16> to vector<32x8xbf16>
    %77 = vector.extract_strided_slice %74 {offsets = [1, 0, 0], sizes = [1, 32, 8], strides = [1, 1, 1]} : vector<4x32x8xbf16> to vector<1x32x8xbf16>
    %78 = vector.shape_cast %77 : vector<1x32x8xbf16> to vector<32x8xbf16>
    %79 = vector.extract_strided_slice %74 {offsets = [2, 0, 0], sizes = [1, 32, 8], strides = [1, 1, 1]} : vector<4x32x8xbf16> to vector<1x32x8xbf16>
    %80 = vector.shape_cast %79 : vector<1x32x8xbf16> to vector<32x8xbf16>
    %81 = vector.extract_strided_slice %74 {offsets = [3, 0, 0], sizes = [1, 32, 8], strides = [1, 1, 1]} : vector<4x32x8xbf16> to vector<1x32x8xbf16>
    %82 = vector.shape_cast %81 : vector<1x32x8xbf16> to vector<32x8xbf16>
    %83 = tpu.concatenate %76, %78, %80, %82 in 1 : vector<32x8xbf16>, vector<32x8xbf16>, vector<32x8xbf16>, vector<32x8xbf16> -> vector<32x32xbf16>
    %c0_18 = arith.constant 0 : index
    %c0_19 = arith.constant 0 : index
    %c0_20 = arith.constant 0 : index
    %84 = vector.load %arg8[%c0_18, %c0_19, %c0_20] : memref<1x32x32xbf16, #tpu.memory_space<vmem>>, vector<1x32x32xbf16>
    %85 = vector.shape_cast %84 : vector<1x32x32xbf16> to vector<32x32xbf16>
    %cst_21 = arith.constant dense<0.000000e+00> : vector<32x32xf32>
    %86 = tpu.matmul %83, %85, %cst_21 {dimension_numbers = #tpu.dot_dimension_numbers<[1], [0], [0], [1], [0, 0, 1, 1], [], []>} : vector<32x32xbf16>, vector<32x32xbf16>, vector<32x32xf32> -> vector<32x32xf32>
    %87 = arith.addf %4, %86 : vector<32x32xf32>
    %c0_22 = arith.constant 0 : index
    %c0_23 = arith.constant 0 : index
    %c0_24 = arith.constant 0 : index
    %88 = vector.load %arg9[%c0_22, %c0_23, %c0_24] : memref<1x1x32xf32, #tpu.memory_space<vmem>>, vector<1x1x32xf32>
    %89 = vector.shape_cast %88 : vector<1x1x32xf32> to vector<1x32xf32>
    %90 = vector.broadcast %89 : vector<1x32xf32> to vector<32x32xf32>
    %91 = arith.addf %87, %90 : vector<32x32xf32>
    %cst_25 = arith.constant dense<0.000000e+00> : vector<32xf32>
    %92 = vector.multi_reduction <add>, %91, %cst_25 [1] : vector<32x32xf32> to vector<32xf32>
    %93 = vector.shape_cast %92 : vector<32xf32> to vector<32x1xf32>
    %cst_26 = arith.constant 3.200000e+01 : f32
    %94 = vector.broadcast %cst_26 : f32 to vector<32x1xf32>
    %95 = arith.divf %93, %94 : vector<32x1xf32>
    %96 = vector.broadcast %95 : vector<32x1xf32> to vector<32x32xf32>
    %97 = arith.subf %91, %96 : vector<32x32xf32>
    %98 = arith.mulf %97, %97 : vector<32x32xf32>
    %cst_27 = arith.constant dense<0.000000e+00> : vector<32xf32>
    %99 = vector.multi_reduction <add>, %98, %cst_27 [1] : vector<32x32xf32> to vector<32xf32>
    %100 = vector.shape_cast %99 : vector<32xf32> to vector<32x1xf32>
    %cst_28 = arith.constant 3.200000e+01 : f32
    %101 = vector.broadcast %cst_28 : f32 to vector<32x1xf32>
    %102 = arith.divf %100, %101 : vector<32x1xf32>
    %cst_29 = arith.constant 9.99999974E-6 : f32
    %103 = vector.broadcast %cst_29 : f32 to vector<32x1xf32>
    %104 = arith.addf %102, %103 : vector<32x1xf32>
    %105 = math.rsqrt %104 : vector<32x1xf32>
    %106 = vector.broadcast %105 : vector<32x1xf32> to vector<32x32xf32>
    %107 = arith.mulf %97, %106 : vector<32x32xf32>
    %108 = arith.truncf %107 : vector<32x32xf32> to vector<32x32xbf16>
    %c0_30 = arith.constant 0 : index
    %c0_31 = arith.constant 0 : index
    %c0_32 = arith.constant 0 : index
    %109 = vector.load %arg10[%c0_30, %c0_31, %c0_32] : memref<1x32x64xbf16, #tpu.memory_space<vmem>>, vector<1x32x64xbf16>
    %110 = vector.shape_cast %109 : vector<1x32x64xbf16> to vector<32x64xbf16>
    %cst_33 = arith.constant dense<0.000000e+00> : vector<32x64xf32>
    %111 = tpu.matmul %108, %110, %cst_33 {dimension_numbers = #tpu.dot_dimension_numbers<[1], [0], [0], [1], [0, 0, 1, 1], [], []>} : vector<32x32xbf16>, vector<32x64xbf16>, vector<32x64xf32> -> vector<32x64xf32>
    %c0_34 = arith.constant 0 : index
    %c0_35 = arith.constant 0 : index
    %c0_36 = arith.constant 0 : index
    %112 = vector.load %arg11[%c0_34, %c0_35, %c0_36] : memref<1x1x64xf32, #tpu.memory_space<vmem>>, vector<1x1x64xf32>
    %113 = vector.shape_cast %112 : vector<1x1x64xf32> to vector<1x64xf32>
    %114 = vector.broadcast %113 : vector<1x64xf32> to vector<32x64xf32>
    %115 = arith.addf %111, %114 : vector<32x64xf32>
    %cst_37 = arith.constant 5.000000e-01 : f32
    %116 = vector.broadcast %cst_37 : f32 to vector<32x64xf32>
    %117 = arith.mulf %116, %115 : vector<32x64xf32>
    %cst_38 = arith.constant 0.707106769 : f32
    %118 = vector.broadcast %cst_38 : f32 to vector<32x64xf32>
    %119 = arith.mulf %115, %118 : vector<32x64xf32>
    %120 = math.erf %119 : vector<32x64xf32>
    %cst_39 = arith.constant 1.000000e+00 : f32
    %121 = vector.broadcast %cst_39 : f32 to vector<32x64xf32>
    %122 = arith.addf %121, %120 : vector<32x64xf32>
    %123 = arith.mulf %117, %122 : vector<32x64xf32>
    %124 = arith.truncf %123 : vector<32x64xf32> to vector<32x64xbf16>
    %c0_40 = arith.constant 0 : index
    %c0_41 = arith.constant 0 : index
    %c0_42 = arith.constant 0 : index
    %125 = vector.load %arg12[%c0_40, %c0_41, %c0_42] : memref<1x64x32xbf16, #tpu.memory_space<vmem>>, vector<1x64x32xbf16>
    %126 = vector.shape_cast %125 : vector<1x64x32xbf16> to vector<64x32xbf16>
    %cst_43 = arith.constant dense<0.000000e+00> : vector<32x32xf32>
    %127 = tpu.matmul %124, %126, %cst_43 {dimension_numbers = #tpu.dot_dimension_numbers<[1], [0], [0], [1], [0, 0, 1, 1], [], []>} : vector<32x64xbf16>, vector<64x32xbf16>, vector<32x32xf32> -> vector<32x32xf32>
    %c0_44 = arith.constant 0 : index
    %c0_45 = arith.constant 0 : index
    %c0_46 = arith.constant 0 : index
    %128 = vector.load %arg13[%c0_44, %c0_45, %c0_46] : memref<1x1x32xf32, #tpu.memory_space<vmem>>, vector<1x1x32xf32>
    %129 = vector.shape_cast %128 : vector<1x1x32xf32> to vector<1x32xf32>
    %130 = vector.broadcast %129 : vector<1x32xf32> to vector<32x32xf32>
    %131 = arith.addf %127, %130 : vector<32x32xf32>
    %132 = arith.addf %91, %131 : vector<32x32xf32>
    %c1_i32 = arith.constant 1 : i32
    %133 = arith.cmpi slt, %arg1, %c1_i32 : i32
    %134 = arith.extui %133 : i1 to i32
    %c0_i32_47 = arith.constant 0 : i32
    %135 = arith.cmpi ne, %134, %c0_i32_47 : i32
    scf.if %135 {
      %139 = vector.shape_cast %132 : vector<32x32xf32> to vector<2x16x32xf32>
      %c0_50 = arith.constant 0 : index
      %c0_51 = arith.constant 0 : index
      %c0_52 = arith.constant 0 : index
      %140 = vector.load %arg16[%c0_50, %c0_51, %c0_52] : memref<2x16x32xf32, #tpu.memory_space<vmem>>, vector<2x16x32xf32>
      tpu.vector_store %arg16[%c0_50, %c0_51, %c0_52], %139 {strides = array<i32>} : memref<2x16x32xf32, #tpu.memory_space<vmem>>, vector<2x16x32xf32>,
    } else {
    }
    %c1_i32_48 = arith.constant 1 : i32
    %136 = arith.cmpi eq, %arg1, %c1_i32_48 : i32
    %137 = arith.extui %136 : i1 to i32
    %c0_i32_49 = arith.constant 0 : i32
    %138 = arith.cmpi ne, %137, %c0_i32_49 : i32
    scf.if %138 {
      %cst_50 = arith.constant dense<0.000000e+00> : vector<32xf32>
      %139 = vector.multi_reduction <add>, %132, %cst_50 [1] : vector<32x32xf32> to vector<32xf32>
      %140 = vector.shape_cast %139 : vector<32xf32> to vector<32x1xf32>
      %cst_51 = arith.constant 3.200000e+01 : f32
      %141 = vector.broadcast %cst_51 : f32 to vector<32x1xf32>
      %142 = arith.divf %140, %141 : vector<32x1xf32>
      %143 = vector.broadcast %142 : vector<32x1xf32> to vector<32x32xf32>
      %144 = arith.subf %132, %143 : vector<32x32xf32>
      %145 = arith.mulf %144, %144 : vector<32x32xf32>
      %cst_52 = arith.constant dense<0.000000e+00> : vector<32xf32>
      %146 = vector.multi_reduction <add>, %145, %cst_52 [1] : vector<32x32xf32> to vector<32xf32>
      %147 = vector.shape_cast %146 : vector<32xf32> to vector<32x1xf32>
      %cst_53 = arith.constant 3.200000e+01 : f32
      %148 = vector.broadcast %cst_53 : f32 to vector<32x1xf32>
      %149 = arith.divf %147, %148 : vector<32x1xf32>
      %cst_54 = arith.constant 9.99999974E-6 : f32
      %150 = vector.broadcast %cst_54 : f32 to vector<32x1xf32>
      %151 = arith.addf %149, %150 : vector<32x1xf32>
      %152 = math.rsqrt %151 : vector<32x1xf32>
      %153 = vector.broadcast %152 : vector<32x1xf32> to vector<32x32xf32>
      %154 = arith.mulf %144, %153 : vector<32x32xf32>
      %c0_55 = arith.constant 0 : index
      %c0_56 = arith.constant 0 : index
      %155 = vector.load %arg14[%c0_55, %c0_56] : memref<1x32xf32, #tpu.memory_space<vmem>>, vector<1x32xf32>
      %156 = vector.broadcast %155 : vector<1x32xf32> to vector<32x32xf32>
      %157 = arith.mulf %154, %156 : vector<32x32xf32>
      %c0_57 = arith.constant 0 : index
      %c0_58 = arith.constant 0 : index
      %158 = vector.load %arg15[%c0_57, %c0_58] : memref<1x32xf32, #tpu.memory_space<vmem>>, vector<1x32xf32>
      %159 = vector.broadcast %158 : vector<1x32xf32> to vector<32x32xf32>
      %160 = arith.addf %157, %159 : vector<32x32xf32>
      %161 = vector.shape_cast %160 : vector<32x32xf32> to vector<2x16x32xf32>
      %c0_59 = arith.constant 0 : index
      %c0_60 = arith.constant 0 : index
      %c0_61 = arith.constant 0 : index
      %162 = vector.load %arg16[%c0_59, %c0_60, %c0_61] : memref<2x16x32xf32, #tpu.memory_space<vmem>>, vector<2x16x32xf32>
      tpu.vector_store %arg16[%c0_59, %c0_60, %c0_61], %161 {strides = array<i32>} : memref<2x16x32xf32, #tpu.memory_space<vmem>>, vector<2x16x32xf32>,
    } else {
    }
    return
  }
  func.func @transform_0(%arg0: i32, %arg1: i32) -> (i32, i32, i32) {
    %c0_i32 = arith.constant 0 : i32
    %c0_i32_0 = arith.constant 0 : i32
    %c0_i32_1 = arith.constant 0 : i32
    return %arg0, %c0_i32, %c0_i32_0 : i32, i32, i32
  }
  func.func @transform_1(%arg0: i32, %arg1: i32) -> (i32, i32) {
    %c0_i32 = arith.constant 0 : i32
    %c0_i32_0 = arith.constant 0 : i32
    %c0_i32_1 = arith.constant 0 : i32
    return %c0_i32, %c0_i32_0 : i32, i32
  }
  func.func @transform_2(%arg0: i32, %arg1: i32) -> (i32, i32) {
    %c0_i32 = arith.constant 0 : i32
    %c0_i32_0 = arith.constant 0 : i32
    %c0_i32_1 = arith.constant 0 : i32
    return %c0_i32, %c0_i32_0 : i32, i32
  }
  func.func @transform_3(%arg0: i32, %arg1: i32) -> (i32, i32) {
    %c0_i32 = arith.constant 0 : i32
    %c0_i32_0 = arith.constant 0 : i32
    %c0_i32_1 = arith.constant 0 : i32
    return %c0_i32, %c0_i32_0 : i32, i32
  }
  func.func @transform_4(%arg0: i32, %arg1: i32) -> (i32, i32, i32) {
    %c0_i32 = arith.constant 0 : i32
    %c0_i32_0 = arith.constant 0 : i32
    %c0_i32_1 = arith.constant 0 : i32
    return %arg1, %c0_i32, %c0_i32_0 : i32, i32, i32
  }
  func.func @transform_5(%arg0: i32, %arg1: i32) -> (i32, i32, i32) {
    %c0_i32 = arith.constant 0 : i32
    %c0_i32_0 = arith.constant 0 : i32
    %c0_i32_1 = arith.constant 0 : i32
    return %arg1, %c0_i32, %c0_i32_0 : i32, i32, i32
  }
  func.func @transform_6(%arg0: i32, %arg1: i32) -> (i32, i32, i32) {
    %c0_i32 = arith.constant 0 : i32
    %c0_i32_0 = arith.constant 0 : i32
    %c0_i32_1 = arith.constant 0 : i32
    return %arg1, %c0_i32, %c0_i32_0 : i32, i32, i32
  }
  func.func @transform_7(%arg0: i32, %arg1: i32) -> (i32, i32, i32) {
    %c0_i32 = arith.constant 0 : i32
    %c0_i32_0 = arith.constant 0 : i32
    %c0_i32_1 = arith.constant 0 : i32
    return %arg1, %c0_i32, %c0_i32_0 : i32, i32, i32
  }
  func.func @transform_8(%arg0: i32, %arg1: i32) -> (i32, i32, i32) {
    %c0_i32 = arith.constant 0 : i32
    %c0_i32_0 = arith.constant 0 : i32
    %c0_i32_1 = arith.constant 0 : i32
    return %arg1, %c0_i32, %c0_i32_0 : i32, i32, i32
  }
  func.func @transform_9(%arg0: i32, %arg1: i32) -> (i32, i32, i32) {
    %c0_i32 = arith.constant 0 : i32
    %c0_i32_0 = arith.constant 0 : i32
    %c0_i32_1 = arith.constant 0 : i32
    return %arg1, %c0_i32, %c0_i32_0 : i32, i32, i32
  }
  func.func @transform_10(%arg0: i32, %arg1: i32) -> (i32, i32, i32) {
    %c0_i32 = arith.constant 0 : i32
    %c0_i32_0 = arith.constant 0 : i32
    %c0_i32_1 = arith.constant 0 : i32
    return %arg1, %c0_i32, %c0_i32_0 : i32, i32, i32
  }
  func.func @transform_11(%arg0: i32, %arg1: i32) -> (i32, i32, i32) {
    %c0_i32 = arith.constant 0 : i32
    %c0_i32_0 = arith.constant 0 : i32
    %c0_i32_1 = arith.constant 0 : i32
    return %arg1, %c0_i32, %c0_i32_0 : i32, i32, i32
  }
  func.func @transform_12(%arg0: i32, %arg1: i32) -> (i32, i32) {
    %c0_i32 = arith.constant 0 : i32
    %c0_i32_0 = arith.constant 0 : i32
    %c0_i32_1 = arith.constant 0 : i32
    return %c0_i32, %c0_i32_0 : i32, i32
  }
  func.func @transform_13(%arg0: i32, %arg1: i32) -> (i32, i32) {
    %c0_i32 = arith.constant 0 : i32
    %c0_i32_0 = arith.constant 0 : i32
    %c0_i32_1 = arith.constant 0 : i32
    return %c0_i32, %c0_i32_0 : i32, i32
  }
  func.func @transform_14(%arg0: i32, %arg1: i32) -> (i32, i32, i32) {
    %c0_i32 = arith.constant 0 : i32
    %c0_i32_0 = arith.constant 0 : i32
    %c0_i32_1 = arith.constant 0 : i32
    return %arg0, %c0_i32, %c0_i32_0 : i32, i32, i32
  }
}

</mosaic_0001>

<llo_original>
// kernel: tpu_custom_call.1
$region0: #{tpu_custom_call.1}
  #allocation0 [shape = 'u32[]', space=smem, size = 0x4, offset = 0x4, fixed_abs, tag = 'smem constant byte address 0x4 - core index']
  #allocation1 [shape = 'u32[144,128]{1,0:T(1,128)}', space=vmem, size = 0x12000, scoped, tag = 'internal scratch']
  %s0 = inlined_call_operand.vmem [shape: bf16[2,16,48], index: 0, kind: input, shape index: {}]
  %s1 = inlined_call_operand.vmem [shape: bf16[48,32], index: 1, kind: input, shape index: {}]
  %s2 = inlined_call_operand.vmem [shape: f32[1,32], index: 2, kind: input, shape index: {}]
  %s3 = inlined_call_operand.hbm [shape: f32[16,32], index: 3, kind: input, shape index: {}]
  %s4 = inlined_call_operand.vmem [shape: bf16[2,32,96], index: 4, kind: input, shape index: {}]
  %s5 = inlined_call_operand.vmem [shape: f32[2,1,96], index: 5, kind: input, shape index: {}]
  %s6 = inlined_call_operand.vmem [shape: bf16[2,32,32], index: 6, kind: input, shape index: {}]
  %s7 = inlined_call_operand.vmem [shape: f32[2,1,32], index: 7, kind: input, shape index: {}]
  %s8 = inlined_call_operand.vmem [shape: bf16[2,32,64], index: 8, kind: input, shape index: {}]
  %s9 = inlined_call_operand.vmem [shape: f32[2,1,64], index: 9, kind: input, shape index: {}]
  %s10 = inlined_call_operand.vmem [shape: bf16[2,64,32], index: 10, kind: input, shape index: {}]
  %s11 = inlined_call_operand.vmem [shape: f32[2,1,32], index: 11, kind: input, shape index: {}]
  %s12 = inlined_call_operand.vmem [shape: f32[1,32], index: 12, kind: input, shape index: {}]
  %s13 = inlined_call_operand.vmem [shape: f32[1,32], index: 13, kind: input, shape index: {}]
  %s14 = inlined_call_operand.hbm [shape: f32[2,16,32], index: 14, kind: output, shape index: {}]
  %s15 = sld [smem:[#allocation0]]
  $region105: #{tpu_custom_call.1} parent=0
    _
  %s17 = ssub.s32 1, %s15
  %s18 = scalar_select 0, %s17, %s15
  $region1: #{tpu_custom_call.1} parent=0
    #allocation2 [shape = 'u8[8192]{0}', space=vmem, size = 0x2000, scoped, tag = 'input window, operand 3, single buffered']
    #allocation3 [shape = 's32[2]{0}', space=sflag, size = 0x8, scoped, tag = 'scoped memory for tpu_custom_call.1']
    #allocation4 [shape = 's32[2]{0}', space=sflag, size = 0x8, scoped, tag = 'scoped memory for tpu_custom_call.1']
    #allocation5 [shape = 'u8[16384]{0}', space=vmem, size = 0x4000, scoped, tag = 'output window, operand 0, single buffered']
    %19 = vsyncpa [#allocation3], 0
    %20 = vsyncpa [#allocation4], 0
    loop: start=0, step=1, limit=4
    $region2: #{tpu_custom_call.1} parent=1 // loop_pre_header
      _
    $region3: #{tpu_custom_call.1} parent=1 // loop_header
      %s22 = sphi 0, %s26
      %p23 = scmp.ge.s32.totalorder %s22, 4
      %s29 = sphi 0, %s41
      %s30 = sphi 0, %s37
      %s31 = sphi 0, %s29
      %s32 = sphi 0, %s30
      %s33 = sphi 0, %s31
      %s34 = sphi 0, %s32
      %s44 = sphi 0, %s46
      %s47 = sphi 0, %s44
      %s48 = sphi 0, %s47
      %s64 = sphi 0, %s48
      %s68 = sphi 0, %s68
      %s70 = sphi 0, %s68
      %s71 = sphi 0, %s70
      %s85 = sphi 0, %s71
      %s89 = sphi 0, %s89
      %s91 = sphi 0, %s89
      %s92 = sphi 0, %s91
      %s106 = sphi 0, %s92
      %s110 = sphi 0, %s110
      %s112 = sphi 0, %s110
      %s113 = sphi 0, %s112
      %s127 = sphi 0, %s113
      %s133 = sphi 0, %s135
      %s136 = sphi 0, %s133
      %s137 = sphi 0, %s136
      %s153 = sphi 0, %s137
      %s159 = sphi 0, %s161
      %s162 = sphi 0, %s159
      %s163 = sphi 0, %s162
      %s179 = sphi 0, %s163
      %s185 = sphi 0, %s187
      %s188 = sphi 0, %s185
      %s189 = sphi 0, %s188
      %s205 = sphi 0, %s189
      %s211 = sphi 0, %s213
      %s214 = sphi 0, %s211
      %s215 = sphi 0, %s214
      %s231 = sphi 0, %s215
      %s237 = sphi 0, %s239
      %s240 = sphi 0, %s237
      %s241 = sphi 0, %s240
      %s257 = sphi 0, %s241
      %s263 = sphi 0, %s265
      %s266 = sphi 0, %s263
      %s267 = sphi 0, %s266
      %s283 = sphi 0, %s267
      %s289 = sphi 0, %s291
      %s292 = sphi 0, %s289
      %s293 = sphi 0, %s292
      %s309 = sphi 0, %s293
      %s315 = sphi 0, %s317
      %s318 = sphi 0, %s315
      %s319 = sphi 0, %s318
      %s335 = sphi 0, %s319
      %s339 = sphi 0, %s339
      %s341 = sphi 0, %s339
      %s342 = sphi 0, %s341
      %s356 = sphi 0, %s342
      %s360 = sphi 0, %s360
      %s362 = sphi 0, %s360
      %s363 = sphi 0, %s362
      %s377 = sphi 0, %s363
      %s383 = sphi 0, %s385
      %s386 = sphi 0, %s383
      %s387 = sphi 0, %s386
      %s403 = sphi 0, %s387
    $region4: #{tpu_custom_call.1} parent=1 // loop_header_branch
      %25 = sbr.rel (%p23) target = $region8
    $region5: #{tpu_custom_call.1} parent=1 // loop_body
      %s27 = ssub.s32 %s22, 1
      %s28 = ssub.s32 %s22, 2
      %s35 = sadd.s32 1, %s30
      %p36 = scmp.ge.s32.totalorder %s35, 2
      %s37 = scalar_select %p36, 0, %s35
      %s38 = sadd.s32 1, %s29
      %s39 = scalar_select %p36, %s38, %s29
      %p40 = scmp.ge.s32.totalorder %s39, 1
      %s41 = scalar_select %p40, 0, %s39
      %s42 = ssub.s32 %s29, %s41
      %p43 = scmp.eq.s32.totalorder %s42, 0
      %s45 = sadd.s32 %s44, 1
      %s46 = scalar_select %p43, %s44, %s45
      %p49 = pneg %p43
      %p50 = scmp.eq.s32.totalorder %s22, 1
      %p51 = por %p49, %p50
      %p52 = scmp.ne.s32.totalorder %s44, %s47
      %p53 = scmp.eq.s32.totalorder %s22, 0
      %p54 = por %p52, %p53
      %p55 = scmp.ne.s32.totalorder %s44, %s47
      %p56 = scmp.eq.s32.totalorder %s27, 1
      %p57 = por %p55, %p56
      %p58 = scmp.ne.s32.totalorder %s47, %s48
      %p59 = scmp.eq.s32.totalorder %s27, 0
      %p60 = por %p58, %p59
      %p61 = scmp.ne.s32.totalorder %s47, %s48
      %p62 = scmp.eq.s32.totalorder %s28, 1
      %p63 = por %p61, %p62
      %p65 = scmp.ne.s32.totalorder %s48, %s64
      %p66 = scmp.eq.s32.totalorder %s28, 0
      %p67 = por %p65, %p66
      %s69 = sadd.s32 %s68, 1
      %p72 = scmp.eq.s32.totalorder %s22, 1
      %p73 = scmp.ne.s32.totalorder %s68, %s70
      %p74 = scmp.eq.s32.totalorder %s22, 0
      %p75 = por %p73, %p74
      %p76 = scmp.ne.s32.totalorder %s68, %s70
      %p77 = scmp.eq.s32.totalorder %s27, 1
      %p78 = por %p76, %p77
      %p79 = scmp.ne.s32.totalorder %s70, %s71
      %p80 = scmp.eq.s32.totalorder %s27, 0
      %p81 = por %p79, %p80
      %p82 = scmp.ne.s32.totalorder %s70, %s71
      %p83 = scmp.eq.s32.totalorder %s28, 1
      %p84 = por %p82, %p83
      %p86 = scmp.ne.s32.totalorder %s71, %s85
      %p87 = scmp.eq.s32.totalorder %s28, 0
      %p88 = por %p86, %p87
      %s90 = sadd.s32 %s89, 1
      %p93 = scmp.eq.s32.totalorder %s22, 1
      %p94 = scmp.ne.s32.totalorder %s89, %s91
      %p95 = scmp.eq.s32.totalorder %s22, 0
      %p96 = por %p94, %p95
      %p97 = scmp.ne.s32.totalorder %s89, %s91
      %p98 = scmp.eq.s32.totalorder %s27, 1
      %p99 = por %p97, %p98
      %p100 = scmp.ne.s32.totalorder %s91, %s92
      %p101 = scmp.eq.s32.totalorder %s27, 0
      %p102 = por %p100, %p101
      %p103 = scmp.ne.s32.totalorder %s91, %s92
      %p104 = scmp.eq.s32.totalorder %s28, 1
      %p105 = por %p103, %p104
      %p107 = scmp.ne.s32.totalorder %s92, %s106
      %p108 = scmp.eq.s32.totalorder %s28, 0
      %p109 = por %p107, %p108
      %s111 = sadd.s32 %s110, 1
      %p114 = scmp.eq.s32.totalorder %s22, 1
      %p115 = scmp.ne.s32.totalorder %s110, %s112
      %p116 = scmp.eq.s32.totalorder %s22, 0
      %p117 = por %p115, %p116
      %p118 = scmp.ne.s32.totalorder %s110, %s112
      %p119 = scmp.eq.s32.totalorder %s27, 1
      %p120 = por %p118, %p119
      %p121 = scmp.ne.s32.totalorder %s112, %s113
      %p122 = scmp.eq.s32.totalorder %s27, 0
      %p123 = por %p121, %p122
      %p124 = scmp.ne.s32.totalorder %s112, %s113
      %p125 = scmp.eq.s32.totalorder %s28, 1
      %p126 = por %p124, %p125
      %p128 = scmp.ne.s32.totalorder %s113, %s127
      %p129 = scmp.eq.s32.totalorder %s28, 0
      %p130 = por %p128, %p129
      %s131 = ssub.s32 %s30, %s37
      %p132 = scmp.eq.s32.totalorder %s131, 0
      %s134 = sadd.s32 %s133, 1
      %s135 = scalar_select %p132, %s133, %s134
      %p138 = pneg %p132
      %p139 = scmp.eq.s32.totalorder %s22, 1
      %p140 = por %p138, %p139
      %p141 = scmp.ne.s32.totalorder %s133, %s136
      %p142 = scmp.eq.s32.totalorder %s22, 0
      %p143 = por %p141, %p142
      %p144 = scmp.ne.s32.totalorder %s133, %s136
      %p145 = scmp.eq.s32.totalorder %s27, 1
      %p146 = por %p144, %p145
      %p147 = scmp.ne.s32.totalorder %s136, %s137
      %p148 = scmp.eq.s32.totalorder %s27, 0
      %p149 = por %p147, %p148
      %p150 = scmp.ne.s32.totalorder %s136, %s137
      %p151 = scmp.eq.s32.totalorder %s28, 1
      %p152 = por %p150, %p151
      %p154 = scmp.ne.s32.totalorder %s137, %s153
      %p155 = scmp.eq.s32.totalorder %s28, 0
      %p156 = por %p154, %p155
      %s157 = ssub.s32 %s30, %s37
      %p158 = scmp.eq.s32.totalorder %s157, 0
      %s160 = sadd.s32 %s159, 1
      %s161 = scalar_select %p158, %s159, %s160
      %p164 = pneg %p158
      %p165 = scmp.eq.s32.totalorder %s22, 1
      %p166 = por %p164, %p165
      %p167 = scmp.ne.s32.totalorder %s159, %s162
      %p168 = scmp.eq.s32.totalorder %s22, 0
      %p169 = por %p167, %p168
      %p170 = scmp.ne.s32.totalorder %s159, %s162
      %p171 = scmp.eq.s32.totalorder %s27, 1
      %p172 = por %p170, %p171
      %p173 = scmp.ne.s32.totalorder %s162, %s163
      %p174 = scmp.eq.s32.totalorder %s27, 0
      %p175 = por %p173, %p174
      %p176 = scmp.ne.s32.totalorder %s162, %s163
      %p177 = scmp.eq.s32.totalorder %s28, 1
      %p178 = por %p176, %p177
      %p180 = scmp.ne.s32.totalorder %s163, %s179
      %p181 = scmp.eq.s32.totalorder %s28, 0
      %p182 = por %p180, %p181
      %s183 = ssub.s32 %s30, %s37
      %p184 = scmp.eq.s32.totalorder %s183, 0
      %s186 = sadd.s32 %s185, 1
      %s187 = scalar_select %p184, %s185, %s186
      %p190 = pneg %p184
      %p191 = scmp.eq.s32.totalorder %s22, 1
      %p192 = por %p190, %p191
      %p193 = scmp.ne.s32.totalorder %s185, %s188
      %p194 = scmp.eq.s32.totalorder %s22, 0
      %p195 = por %p193, %p194
      %p196 = scmp.ne.s32.totalorder %s185, %s188
      %p197 = scmp.eq.s32.totalorder %s27, 1
      %p198 = por %p196, %p197
      %p199 = scmp.ne.s32.totalorder %s188, %s189
      %p200 = scmp.eq.s32.totalorder %s27, 0
      %p201 = por %p199, %p200
      %p202 = scmp.ne.s32.totalorder %s188, %s189
      %p203 = scmp.eq.s32.totalorder %s28, 1
      %p204 = por %p202, %p203
      %p206 = scmp.ne.s32.totalorder %s189, %s205
      %p207 = scmp.eq.s32.totalorder %s28, 0
      %p208 = por %p206, %p207
      %s209 = ssub.s32 %s30, %s37
      %p210 = scmp.eq.s32.totalorder %s209, 0
      %s212 = sadd.s32 %s211, 1
      %s213 = scalar_select %p210, %s211, %s212
      %p216 = pneg %p210
      %p217 = scmp.eq.s32.totalorder %s22, 1
      %p218 = por %p216, %p217
      %p219 = scmp.ne.s32.totalorder %s211, %s214
      %p220 = scmp.eq.s32.totalorder %s22, 0
      %p221 = por %p219, %p220
      %p222 = scmp.ne.s32.totalorder %s211, %s214
      %p223 = scmp.eq.s32.totalorder %s27, 1
      %p224 = por %p222, %p223
      %p225 = scmp.ne.s32.totalorder %s214, %s215
      %p226 = scmp.eq.s32.totalorder %s27, 0
      %p227 = por %p225, %p226
      %p228 = scmp.ne.s32.totalorder %s214, %s215
      %p229 = scmp.eq.s32.totalorder %s28, 1
      %p230 = por %p228, %p229
      %p232 = scmp.ne.s32.totalorder %s215, %s231
      %p233 = scmp.eq.s32.totalorder %s28, 0
      %p234 = por %p232, %p233
      %s235 = ssub.s32 %s30, %s37
      %p236 = scmp.eq.s32.totalorder %s235, 0
      %s238 = sadd.s32 %s237, 1
      %s239 = scalar_select %p236, %s237, %s238
      %p242 = pneg %p236
      %p243 = scmp.eq.s32.totalorder %s22, 1
      %p244 = por %p242, %p243
      %p245 = scmp.ne.s32.totalorder %s237, %s240
      %p246 = scmp.eq.s32.totalorder %s22, 0
      %p247 = por %p245, %p246
      %p248 = scmp.ne.s32.totalorder %s237, %s240
      %p249 = scmp.eq.s32.totalorder %s27, 1
      %p250 = por %p248, %p249
      %p251 = scmp.ne.s32.totalorder %s240, %s241
      %p252 = scmp.eq.s32.totalorder %s27, 0
      %p253 = por %p251, %p252
      %p254 = scmp.ne.s32.totalorder %s240, %s241
      %p255 = scmp.eq.s32.totalorder %s28, 1
      %p256 = por %p254, %p255
      %p258 = scmp.ne.s32.totalorder %s241, %s257
      %p259 = scmp.eq.s32.totalorder %s28, 0
      %p260 = por %p258, %p259
      %s261 = ssub.s32 %s30, %s37
      %p262 = scmp.eq.s32.totalorder %s261, 0
      %s264 = sadd.s32 %s263, 1
      %s265 = scalar_select %p262, %s263, %s264
      %p268 = pneg %p262
      %p269 = scmp.eq.s32.totalorder %s22, 1
      %p270 = por %p268, %p269
      %p271 = scmp.ne.s32.totalorder %s263, %s266
      %p272 = scmp.eq.s32.totalorder %s22, 0
      %p273 = por %p271, %p272
      %p274 = scmp.ne.s32.totalorder %s263, %s266
      %p275 = scmp.eq.s32.totalorder %s27, 1
      %p276 = por %p274, %p275
      %p277 = scmp.ne.s32.totalorder %s266, %s267
      %p278 = scmp.eq.s32.totalorder %s27, 0
      %p279 = por %p277, %p278
      %p280 = scmp.ne.s32.totalorder %s266, %s267
      %p281 = scmp.eq.s32.totalorder %s28, 1
      %p282 = por %p280, %p281
      %p284 = scmp.ne.s32.totalorder %s267, %s283
      %p285 = scmp.eq.s32.totalorder %s28, 0
      %p286 = por %p284, %p285
      %s287 = ssub.s32 %s30, %s37
      %p288 = scmp.eq.s32.totalorder %s287, 0
      %s290 = sadd.s32 %s289, 1
      %s291 = scalar_select %p288, %s289, %s290
      %p294 = pneg %p288
      %p295 = scmp.eq.s32.totalorder %s22, 1
      %p296 = por %p294, %p295
      %p297 = scmp.ne.s32.totalorder %s289, %s292
      %p298 = scmp.eq.s32.totalorder %s22, 0
      %p299 = por %p297, %p298
      %p300 = scmp.ne.s32.totalorder %s289, %s292
      %p301 = scmp.eq.s32.totalorder %s27, 1
      %p302 = por %p300, %p301
      %p303 = scmp.ne.s32.totalorder %s292, %s293
      %p304 = scmp.eq.s32.totalorder %s27, 0
      %p305 = por %p303, %p304
      %p306 = scmp.ne.s32.totalorder %s292, %s293
      %p307 = scmp.eq.s32.totalorder %s28, 1
      %p308 = por %p306, %p307
      %p310 = scmp.ne.s32.totalorder %s293, %s309
      %p311 = scmp.eq.s32.totalorder %s28, 0
      %p312 = por %p310, %p311
      %s313 = ssub.s32 %s30, %s37
      %p314 = scmp.eq.s32.totalorder %s313, 0
      %s316 = sadd.s32 %s315, 1
      %s317 = scalar_select %p314, %s315, %s316
      %p320 = pneg %p314
      %p321 = scmp.eq.s32.totalorder %s22, 1
      %p322 = por %p320, %p321
      %p323 = scmp.ne.s32.totalorder %s315, %s318
      %p324 = scmp.eq.s32.totalorder %s22, 0
      %p325 = por %p323, %p324
      %p326 = scmp.ne.s32.totalorder %s315, %s318
      %p327 = scmp.eq.s32.totalorder %s27, 1
      %p328 = por %p326, %p327
      %p329 = scmp.ne.s32.totalorder %s318, %s319
      %p330 = scmp.eq.s32.totalorder %s27, 0
      %p331 = por %p329, %p330
      %p332 = scmp.ne.s32.totalorder %s318, %s319
      %p333 = scmp.eq.s32.totalorder %s28, 1
      %p334 = por %p332, %p333
      %p336 = scmp.ne.s32.totalorder %s319, %s335
      %p337 = scmp.eq.s32.totalorder %s28, 0
      %p338 = por %p336, %p337
      %s340 = sadd.s32 %s339, 1
      %p343 = scmp.eq.s32.totalorder %s22, 1
      %p344 = scmp.ne.s32.totalorder %s339, %s341
      %p345 = scmp.eq.s32.totalorder %s22, 0
      %p346 = por %p344, %p345
      %p347 = scmp.ne.s32.totalorder %s339, %s341
      %p348 = scmp.eq.s32.totalorder %s27, 1
      %p349 = por %p347, %p348
      %p350 = scmp.ne.s32.totalorder %s341, %s342
      %p351 = scmp.eq.s32.totalorder %s27, 0
      %p352 = por %p350, %p351
      %p353 = scmp.ne.s32.totalorder %s341, %s342
      %p354 = scmp.eq.s32.totalorder %s28, 1
      %p355 = por %p353, %p354
      %p357 = scmp.ne.s32.totalorder %s342, %s356
      %p358 = scmp.eq.s32.totalorder %s28, 0
      %p359 = por %p357, %p358
      %s361 = sadd.s32 %s360, 1
      %p364 = scmp.eq.s32.totalorder %s22, 1
      %p365 = scmp.ne.s32.totalorder %s360, %s362
      %p366 = scmp.eq.s32.totalorder %s22, 0
      %p367 = por %p365, %p366
      %p368 = scmp.ne.s32.totalorder %s360, %s362
      %p369 = scmp.eq.s32.totalorder %s27, 1
      %p370 = por %p368, %p369
      %p371 = scmp.ne.s32.totalorder %s362, %s363
      %p372 = scmp.eq.s32.totalorder %s27, 0
      %p373 = por %p371, %p372
      %p374 = scmp.ne.s32.totalorder %s362, %s363
      %p375 = scmp.eq.s32.totalorder %s28, 1
      %p376 = por %p374, %p375
      %p378 = scmp.ne.s32.totalorder %s363, %s377
      %p379 = scmp.eq.s32.totalorder %s28, 0
      %p380 = por %p378, %p379
      %s381 = ssub.s32 %s29, %s41
      %p382 = scmp.eq.s32.totalorder %s381, 0
      %s384 = sadd.s32 %s383, 1
      %s385 = scalar_select %p382, %s383, %s384
      %p388 = pneg %p382
      %p389 = scmp.eq.s32.totalorder %s22, 1
      %p390 = por %p388, %p389
      %p391 = scmp.ne.s32.totalorder %s383, %s386
      %p392 = scmp.eq.s32.totalorder %s22, 0
      %p393 = por %p391, %p392
      %p394 = scmp.ne.s32.totalorder %s383, %s386
      %p395 = scmp.eq.s32.totalorder %s27, 1
      %p396 = por %p394, %p395
      %p397 = scmp.ne.s32.totalorder %s386, %s387
      %p398 = scmp.eq.s32.totalorder %s27, 0
      %p399 = por %p397, %p398
      %p400 = scmp.ne.s32.totalorder %s386, %s387
      %p401 = scmp.eq.s32.totalorder %s28, 1
      %p402 = por %p400, %p401
      %p404 = scmp.ne.s32.totalorder %s387, %s403
      %p405 = scmp.eq.s32.totalorder %s28, 0
      %p406 = por %p404, %p405
      %p407 = scmp.le.s32.totalorder 1, %s22
      %p408 = scmp.lt.s32.totalorder %s22, 3
      %p409 = pnand %p407, %p408
      %p410 = pneg %p409
      // Predicated region
      $region9: #{tpu_custom_call.1} parent=5 // pred_check
        _
      $region10: #{tpu_custom_call.1} parent=5 // pred_check_branch
        %412 = sbr.rel (%p409) target = $region12
      $region11: #{tpu_custom_call.1} parent=5 // pred_region
        %s413 = ssub.s32 %s22, 1
        // Predicated region
        $region13: #{tpu_custom_call.1} parent=11 // pred_check
          %p414 = pneg %p60
        $region14: #{tpu_custom_call.1} parent=11 // pred_check_branch
          %416 = sbr.rel (%p414) target = $region16
        $region15: #{tpu_custom_call.1} parent=11 // pred_region
          %s417 = smul.u32 2, %s31
          %p418 = scmp.lt.s32.totalorder %s417, 1
          %s419 = scalar_select %p418, %s417, 1
          %s420 = smul.addr %s419, 2
          %s421 = smul.addr %s420, 4
          %s422 = scalar_lea.vmem %s0, %s421
          %s423 = smul.u32 2, %s31
        $region16: #{tpu_custom_call.1} parent=11 // pred_fallthru
          _
        // Predicated region
        $region17: #{tpu_custom_call.1} parent=11 // pred_check
          %p424 = pneg %p81
        $region18: #{tpu_custom_call.1} parent=11 // pred_check_branch
          %426 = sbr.rel (%p424) target = $region20
        $region19: #{tpu_custom_call.1} parent=11 // pred_region
          _
        $region20: #{tpu_custom_call.1} parent=11 // pred_fallthru
          _
        // Predicated region
        $region21: #{tpu_custom_call.1} parent=11 // pred_check
          %p427 = pneg %p102
        $region22: #{tpu_custom_call.1} parent=11 // pred_check_branch
          %429 = sbr.rel (%p427) target = $region24
        $region23: #{tpu_custom_call.1} parent=11 // pred_region
          _
        $region24: #{tpu_custom_call.1} parent=11 // pred_fallthru
          _
        // Predicated region
        $region25: #{tpu_custom_call.1} parent=11 // pred_check
          %p430 = pneg %p123
        $region26: #{tpu_custom_call.1} parent=11 // pred_check_branch
          %432 = sbr.rel (%p430) target = $region28
        $region27: #{tpu_custom_call.1} parent=11 // pred_region
          %s434 = ssub.s32 256, 256
          %435 = vsyncadd [#allocation3], %s434
          %s436 = sshll.u32 [#allocation2], 4
          %s437 = int_to_ptr.vmem [resolvable:$true] %s436
          %442 = dma.hbm_to_vmem [thread:$0]  %s3, 256, %s437, [#allocation3], 128, 128, 8
        $region28: #{tpu_custom_call.1} parent=11 // pred_fallthru
          _
        // Predicated region
        $region29: #{tpu_custom_call.1} parent=11 // pred_check
          %p443 = pneg %p352
        $region30: #{tpu_custom_call.1} parent=11 // pred_check_branch
          %445 = sbr.rel (%p443) target = $region32
        $region31: #{tpu_custom_call.1} parent=11 // pred_region
          _
        $region32: #{tpu_custom_call.1} parent=11 // pred_fallthru
          _
        // Predicated region
        $region33: #{tpu_custom_call.1} parent=11 // pred_check
          %p446 = pneg %p373
        $region34: #{tpu_custom_call.1} parent=11 // pred_check_branch
          %448 = sbr.rel (%p446) target = $region36
        $region35: #{tpu_custom_call.1} parent=11 // pred_region
          _
        $region36: #{tpu_custom_call.1} parent=11 // pred_fallthru
          _
      $region12: #{tpu_custom_call.1} parent=5 // pred_fallthru
        _
      %p449 = scmp.lt.s32.totalorder %s22, 2
      // Predicated region
      $region37: #{tpu_custom_call.1} parent=5 // pred_check
        %p450 = pneg %p449
      $region38: #{tpu_custom_call.1} parent=5 // pred_check_branch
        %452 = sbr.rel (%p450) target = $region40
      $region39: #{tpu_custom_call.1} parent=5 // pred_region
        // Predicated region
        $region41: #{tpu_custom_call.1} parent=39 // pred_check
          %p453 = pneg %p143
        $region42: #{tpu_custom_call.1} parent=39 // pred_check_branch
          %455 = sbr.rel (%p453) target = $region44
        $region43: #{tpu_custom_call.1} parent=39 // pred_region
          %p456 = scmp.lt.s32.totalorder %s30, 1
          %s457 = scalar_select %p456, %s30, 1
          %s458 = smul.addr %s457, 4
          %s459 = smul.addr %s458, 4
          %s460 = scalar_lea.vmem %s4, %s459
        $region44: #{tpu_custom_call.1} parent=39 // pred_fallthru
          _
        // Predicated region
        $region45: #{tpu_custom_call.1} parent=39 // pred_check
          %p461 = pneg %p169
        $region46: #{tpu_custom_call.1} parent=39 // pred_check_branch
          %463 = sbr.rel (%p461) target = $region48
        $region47: #{tpu_custom_call.1} parent=39 // pred_region
          %p464 = scmp.lt.s32.totalorder %s30, 1
          %s465 = scalar_select %p464, %s30, 1
          %s466 = scalar_lea.vmem %s5, %s465
        $region48: #{tpu_custom_call.1} parent=39 // pred_fallthru
          _
        // Predicated region
        $region49: #{tpu_custom_call.1} parent=39 // pred_check
          %p467 = pneg %p195
        $region50: #{tpu_custom_call.1} parent=39 // pred_check_branch
          %469 = sbr.rel (%p467) target = $region52
        $region51: #{tpu_custom_call.1} parent=39 // pred_region
          %p470 = scmp.lt.s32.totalorder %s30, 1
          %s471 = scalar_select %p470, %s30, 1
          %s472 = smul.addr %s471, 4
          %s473 = smul.addr %s472, 4
          %s474 = scalar_lea.vmem %s6, %s473
        $region52: #{tpu_custom_call.1} parent=39 // pred_fallthru
          _
        // Predicated region
        $region53: #{tpu_custom_call.1} parent=39 // pred_check
          %p475 = pneg %p221
        $region54: #{tpu_custom_call.1} parent=39 // pred_check_branch
          %477 = sbr.rel (%p475) target = $region56
        $region55: #{tpu_custom_call.1} parent=39 // pred_region
          %p478 = scmp.lt.s32.totalorder %s30, 1
          %s479 = scalar_select %p478, %s30, 1
          %s480 = scalar_lea.vmem %s7, %s479
        $region56: #{tpu_custom_call.1} parent=39 // pred_fallthru
          _
        // Predicated region
        $region57: #{tpu_custom_call.1} parent=39 // pred_check
          %p481 = pneg %p247
        $region58: #{tpu_custom_call.1} parent=39 // pred_check_branch
          %483 = sbr.rel (%p481) target = $region60
        $region59: #{tpu_custom_call.1} parent=39 // pred_region
          %p484 = scmp.lt.s32.totalorder %s30, 1
          %s485 = scalar_select %p484, %s30, 1
          %s486 = smul.addr %s485, 4
          %s487 = smul.addr %s486, 4
          %s488 = scalar_lea.vmem %s8, %s487
        $region60: #{tpu_custom_call.1} parent=39 // pred_fallthru
          _
        // Predicated region
        $region61: #{tpu_custom_call.1} parent=39 // pred_check
          %p489 = pneg %p273
        $region62: #{tpu_custom_call.1} parent=39 // pred_check_branch
          %491 = sbr.rel (%p489) target = $region64
        $region63: #{tpu_custom_call.1} parent=39 // pred_region
          %p492 = scmp.lt.s32.totalorder %s30, 1
          %s493 = scalar_select %p492, %s30, 1
          %s494 = scalar_lea.vmem %s9, %s493
        $region64: #{tpu_custom_call.1} parent=39 // pred_fallthru
          _
        // Predicated region
        $region65: #{tpu_custom_call.1} parent=39 // pred_check
          %p495 = pneg %p299
        $region66: #{tpu_custom_call.1} parent=39 // pred_check_branch
          %497 = sbr.rel (%p495) target = $region68
        $region67: #{tpu_custom_call.1} parent=39 // pred_region
          %p498 = scmp.lt.s32.totalorder %s30, 1
          %s499 = scalar_select %p498, %s30, 1
          %s500 = smul.addr %s499, 8
          %s501 = smul.addr %s500, 4
          %s502 = scalar_lea.vmem %s10, %s501
        $region68: #{tpu_custom_call.1} parent=39 // pred_fallthru
          _
        // Predicated region
        $region69: #{tpu_custom_call.1} parent=39 // pred_check
          %p503 = pneg %p325
        $region70: #{tpu_custom_call.1} parent=39 // pred_check_branch
          %505 = sbr.rel (%p503) target = $region72
        $region71: #{tpu_custom_call.1} parent=39 // pred_region
          %p506 = scmp.lt.s32.totalorder %s30, 1
          %s507 = scalar_select %p506, %s30, 1
          %s508 = scalar_lea.vmem %s11, %s507
        $region72: #{tpu_custom_call.1} parent=39 // pred_fallthru
          _
      $region40: #{tpu_custom_call.1} parent=5 // pred_fallthru
        _
      %p509 = scmp.le.s32.totalorder 1, %s22
      %p510 = scmp.lt.s32.totalorder %s22, 3
      %p511 = pnand %p509, %p510
      %p512 = pneg %p511
      // Predicated region
      $region73: #{tpu_custom_call.1} parent=5 // pred_check
        _
      $region74: #{tpu_custom_call.1} parent=5 // pred_check_branch
        %514 = sbr.rel (%p511) target = $region76
      $region75: #{tpu_custom_call.1} parent=5 // pred_region
        %s515 = ssub.s32 %s22, 1
        // Predicated region
        $region77: #{tpu_custom_call.1} parent=75 // pred_check
          %p516 = pneg %p123
        $region78: #{tpu_custom_call.1} parent=75 // pred_check_branch
          %518 = sbr.rel (%p516) target = $region80
        $region79: #{tpu_custom_call.1} parent=75 // pred_region
          %519 = dma.done [#allocation3], 256
        $region80: #{tpu_custom_call.1} parent=75 // pred_fallthru
          _
        %s520 = smul.u32 2, %s31
        %p521 = scmp.lt.s32.totalorder %s520, 1
        %s522 = scalar_select %p521, %s520, 1
        %s523 = smul.addr %s522, 2
        %s524 = smul.addr %s523, 4
        %s525 = scalar_lea.vmem %s0, %s524
        %p526 = pneg %p60
        %p527 = pneg %p57
        %p528 = pneg %p81
        %p529 = pneg %p78
        %p530 = pneg %p102
        %p531 = pneg %p99
        %p532 = pneg %p123
        %p533 = pneg %p120
        %p534 = scmp.lt.s32.totalorder %s32, 1
        %s535 = scalar_select %p534, %s32, 1
        %s536 = smul.addr %s535, 4
        %s537 = smul.addr %s536, 4
        %s538 = scalar_lea.vmem %s4, %s537
        %p539 = pneg %p149
        %p540 = pneg %p146
        %p541 = scmp.lt.s32.totalorder %s32, 1
        %s542 = scalar_select %p541, %s32, 1
        %s543 = scalar_lea.vmem %s5, %s542
        %p544 = pneg %p175
        %p545 = pneg %p172
        %p546 = scmp.lt.s32.totalorder %s32, 1
        %s547 = scalar_select %p546, %s32, 1
        %s548 = smul.addr %s547, 4
        %s549 = smul.addr %s548, 4
        %s550 = scalar_lea.vmem %s6, %s549
        %p551 = pneg %p201
        %p552 = pneg %p198
        %p553 = scmp.lt.s32.totalorder %s32, 1
        %s554 = scalar_select %p553, %s32, 1
        %s555 = scalar_lea.vmem %s7, %s554
        %p556 = pneg %p227
        %p557 = pneg %p224
        %p558 = scmp.lt.s32.totalorder %s32, 1
        %s559 = scalar_select %p558, %s32, 1
        %s560 = smul.addr %s559, 4
        %s561 = smul.addr %s560, 4
        %s562 = scalar_lea.vmem %s8, %s561
        %p563 = pneg %p253
        %p564 = pneg %p250
        %p565 = scmp.lt.s32.totalorder %s32, 1
        %s566 = scalar_select %p565, %s32, 1
        %s567 = scalar_lea.vmem %s9, %s566
        %p568 = pneg %p279
        %p569 = pneg %p276
        %p570 = scmp.lt.s32.totalorder %s32, 1
        %s571 = scalar_select %p570, %s32, 1
        %s572 = smul.addr %s571, 8
        %s573 = smul.addr %s572, 4
        %s574 = scalar_lea.vmem %s10, %s573
        %p575 = pneg %p305
        %p576 = pneg %p302
        %p577 = scmp.lt.s32.totalorder %s32, 1
        %s578 = scalar_select %p577, %s32, 1
        %s579 = scalar_lea.vmem %s11, %s578
        %p580 = pneg %p331
        %p581 = pneg %p328
        %p582 = pneg %p352
        %p583 = pneg %p349
        %p584 = pneg %p373
        %p585 = pneg %p370
        %p586 = pneg %p399
        %p587 = pneg %p396
        %s588 = smul.u32 2, %s31
        %p589 = scmp.lt.s32.totalorder %s588, 1
        %s590 = scalar_select %p589, %s588, 1
        %s591 = smul.addr %s590, 2
        %s592 = smul.addr %s591, 4
        %s593 = scalar_lea.vmem %s0, %s592
        %s594 = smul.u32 2, %s31
        %p595 = scmp.lt.s32.totalorder %s32, 1
        %s596 = scalar_select %p595, %s32, 1
        %s597 = smul.addr %s596, 4
        %s598 = smul.addr %s597, 4
        %s599 = scalar_lea.vmem %s4, %s598
        %p600 = scmp.lt.s32.totalorder %s32, 1
        %s601 = scalar_select %p600, %s32, 1
        %s602 = scalar_lea.vmem %s5, %s601
        %p603 = scmp.lt.s32.totalorder %s32, 1
        %s604 = scalar_select %p603, %s32, 1
        %s605 = smul.addr %s604, 4
        %s606 = smul.addr %s605, 4
        %s607 = scalar_lea.vmem %s6, %s606
        %p608 = scmp.lt.s32.totalorder %s32, 1
        %s609 = scalar_select %p608, %s32, 1
        %s610 = scalar_lea.vmem %s7, %s609
        %p611 = scmp.lt.s32.totalorder %s32, 1
        %s612 = scalar_select %p611, %s32, 1
        %s613 = smul.addr %s612, 4
        %s614 = smul.addr %s613, 4
        %s615 = scalar_lea.vmem %s8, %s614
        %p616 = scmp.lt.s32.totalorder %s32, 1
        %s617 = scalar_select %p616, %s32, 1
        %s618 = scalar_lea.vmem %s9, %s617
        %p619 = scmp.lt.s32.totalorder %s32, 1
        %s620 = scalar_select %p619, %s32, 1
        %s621 = smul.addr %s620, 8
        %s622 = smul.addr %s621, 4
        %s623 = scalar_lea.vmem %s10, %s622
        %p624 = scmp.lt.s32.totalorder %s32, 1
        %s625 = scalar_select %p624, %s32, 1
        %s626 = scalar_lea.vmem %s11, %s625
        %s627 = smul.u32 2, %s31
        %p629 = scmp.eq.s32.totalorder %s32, 0
        // Predicated region
        $region81: #{tpu_custom_call.1} parent=75 // pred_check
          %p630 = pneg %p629
        $region82: #{tpu_custom_call.1} parent=75 // pred_check_branch
          %632 = sbr.rel (%p630) target = $region84
        $region83: #{tpu_custom_call.1} parent=75 // pred_region
          %v633 = vld [vmem:[%s593] sm:$0xf]
          %v634 = vld [vmem:[%s593 + $0x4] sm:$0xf]
          %v635 = vld [vmem:[%s593 + $0x8] sm:$0xf]
          %v636 = vld [vmem:[%s593 + $0xc] sm:$0xf]
          %v637 = vld [vmem:[%s1] sm:$0xf]
          %v638 = vld [vmem:[%s1 + $0x4] sm:$0xf]
          %v639 = vld [vmem:[%s1 + $0x8] sm:$0xf]
          %v640 = vld [vmem:[%s1 + $0xc] sm:$0xf]
          %v641 = vld [vmem:[%s1 + $0x10] sm:$0xf]
          %v642 = vld [vmem:[%s1 + $0x14] sm:$0xf]
          %v647 = vunpack.c.l.b16 %v633
          %v648 = vunpack.c.l.b16 %v634
          %v649 = vunpack.c.l.b16 %v635
          %v650 = vunpack.c.l.b16 %v636
          %v651 = vpack.c.b16 %v648, %v647
          %v652 = vpack.c.b16 %v650, %v649
          %v659 = vunpack.c.l.b16 %v637
          %v660 = vunpack.c.l.b16 %v638
          %v661 = vunpack.c.l.b16 %v639
          %v662 = vunpack.c.l.b16 %v640
          %v663 = vunpack.c.l.b16 %v641
          %v664 = vunpack.c.l.b16 %v642
          %v665 = vpack.c.b16 %v660, %v659
          %v666 = vpack.c.b16 %v662, %v661
          %v667 = vpack.c.b16 %v664, %v663
          %vm671 = vcmask 392192
          %v673 = vsel %vm671, %v651, 0
          %v676 = vsel %vm671, %v652, 0
          %678 = vmatprep.subr.bf16.mxu0 0
          %679 = vmatpush1.bf16.msra.mxu0 %v665
          %680 = vmatprep.subr.bf16.mxu0 0
          %681 = vmatpush1.bf16.msra.mxu0 %v666
          %682 = vmatprep.subr.bf16.mxu0 0
          %683 = vmatpush1.bf16.msra.mxu0 %v667
          %684 = vmatprep.subr.bf16.mxu0 0
          %685 = vmatpush1.bf16.msra.mxu0 0
          %686 = vmatprep.subr.bf16.mxu0 0
          %687 = vmatpush1.bf16.msra.mxu0 0
          %688 = vmatprep.subr.bf16.mxu0 0
          %689 = vmatpush1.bf16.msra.mxu0 0
          %690 = vmatprep.subr.bf16.mxu0 0
          %691 = vmatpush1.bf16.msra.mxu0 0
          %692 = vmatprep.subr.bf16.mxu0 0
          %693 = vmatpush1.bf16.msra.mxu0 0
          %694 = vmatprep.subr.bf16.mxu0 0
          %695 = vmatpush1.bf16.msra.mxu0 0
          %696 = vmatprep.subr.bf16.mxu0 0
          %697 = vmatpush1.bf16.msra.mxu0 0
          %698 = vmatprep.subr.bf16.mxu0 0
          %699 = vmatpush1.bf16.msra.mxu0 0
          %700 = vmatprep.subr.bf16.mxu0 0
          %701 = vmatpush1.bf16.msra.mxu0 0
          %702 = vmatprep.subr.bf16.mxu0 0
          %703 = vmatpush1.bf16.msra.mxu0 0
          %704 = vmatprep.subr.bf16.mxu0 0
          %705 = vmatpush1.bf16.msra.mxu0 0
          %706 = vmatprep.subr.bf16.mxu0 0
          %707 = vmatpush1.bf16.msra.mxu0 0
          %708 = vmatprep.subr.bf16.mxu0 0
          %709 = vmatpush1.bf16.msra.mxu0 0
          %710 = vmatprep.mubr.bf16.mxu0 0
          %711 = vmatmul.mubr.bf16.gmra.mrb[0].mxu0 %v673
          %v712 = vpop.f32.mrb[0].mxu0
          %v713 = vadd.f32 0.0, %v712
          %v714 = vpop.f32.mrb[0].mxu0
          %v715 = vpop.f32.mrb[0].mxu0
          %v716 = vadd.f32 0.0, %v715
          %v717 = vpop.f32.mrb[0].mxu0
          %718 = vmatprep.mubr.bf16.mxu0 0
          %719 = vmatmul.mubr.bf16.gmra.mrb[0].mxu0 %v676
          %v720 = vpop.f32.mrb[0].mxu0
          %v721 = vadd.f32 0.0, %v720
          %v722 = vpop.f32.mrb[0].mxu0
          %v723 = vpop.f32.mrb[0].mxu0
          %v724 = vadd.f32 0.0, %v723
          %v725 = vpop.f32.mrb[0].mxu0
          %726 = vdwg.mxu0
          %v727 = vld [vmem:[%s2] sm:$0x1]
          %v729 = vlaneseq
          %v730 = vshrl.u32 %v729, 7
          %v731 = vsub.s32 0, %v730
          %v732 = vrot.slane %v727, %v731
          %v734 = vadd.f32 %v713, %v732
          %v735 = vadd.f32 %v716, %v732
          %v736 = vadd.f32 %v721, %v732
          %v737 = vadd.f32 %v724, %v732
          %v738 = vld [vmem:[#allocation2] sm:$0xff]
          %v739 = vld [vmem:[#allocation2 + $0x8] sm:$0xff]
          %v740 = vadd.f32 %v734, %v738
          %v741 = vadd.f32 %v735, %v739
          %v742 = vadd.f32 %v736, %v738
          %v743 = vadd.f32 %v737, %v739
          %vm744 = vcmask 261120
          %745 = vst.msk [vmem:[#allocation5] sm:$0xff] %vm744, %v740
          %746 = vst.msk [vmem:[#allocation5 + $0x8] sm:$0xff] %vm744, %v741
          %747 = vst.msk [vmem:[#allocation5 + $0x10] sm:$0xff] %vm744, %v742
          %748 = vst.msk [vmem:[#allocation5 + $0x18] sm:$0xff] %vm744, %v743
        $region84: #{tpu_custom_call.1} parent=75 // pred_fallthru
          _
        %v749 = vld [vmem:[#allocation5] sm:$0xff]
        %v750 = vld [vmem:[#allocation5 + $0x8] sm:$0xff]
        %v751 = vld [vmem:[#allocation5 + $0x10] sm:$0xff]
        %v752 = vld [vmem:[#allocation5 + $0x18] sm:$0xff]
        %vm753 = vcmask 261120
        %v754 = vsel %vm753, %v749, 0.0
        %755 = vadd.xlane.f32.xlu0 %v754
        %v756 = vpop.xlane.xlu0 %755
        %v757 = vsel %vm753, %v750, 0.0
        %758 = vadd.xlane.f32.xlu0 %v757
        %v759 = vpop.xlane.xlu0 %758
        %v760 = vsel %vm753, %v751, 0.0
        %761 = vadd.xlane.f32.xlu0 %v760
        %v762 = vpop.xlane.xlu0 %761
        %v763 = vsel %vm753, %v752, 0.0
        %764 = vadd.xlane.f32.xlu0 %v763
        %v765 = vpop.xlane.xlu0 %764
        %v766 = vrcp.pop 32.0
        %v767 = vmul.f32 %v756, %v766
        %v768 = vmul.f32 %v759, %v766
        %v769 = vmul.f32 %v762, %v766
        %v770 = vmul.f32 %v765, %v766
        %v771 = vsub.f32 %v749, %v767
        %v772 = vsub.f32 %v750, %v768
        %v773 = vsub.f32 %v751, %v769
        %v774 = vsub.f32 %v752, %v770
        %v775 = vmul.f32 %v771, %v771
        %v776 = vmul.f32 %v772, %v772
        %v777 = vmul.f32 %v773, %v773
        %v778 = vmul.f32 %v774, %v774
        %v779 = vsel %vm753, %v775, 0.0
        %780 = vadd.xlane.f32.xlu0 %v779
        %v781 = vpop.xlane.xlu0 %780
        %v782 = vsel %vm753, %v776, 0.0
        %783 = vadd.xlane.f32.xlu0 %v782
        %v784 = vpop.xlane.xlu0 %783
        %v785 = vsel %vm753, %v777, 0.0
        %786 = vadd.xlane.f32.xlu0 %v785
        %v787 = vpop.xlane.xlu0 %786
        %v788 = vsel %vm753, %v778, 0.0
        %789 = vadd.xlane.f32.xlu0 %v788
        %v790 = vpop.xlane.xlu0 %789
        %v791 = vmul.f32 %v781, %v766
        %v792 = vmul.f32 %v784, %v766
        %v793 = vmul.f32 %v787, %v766
        %v794 = vmul.f32 %v790, %v766
        %v795 = vadd.f32 %v791, 1e-05
        %v796 = vadd.f32 %v792, 1e-05
        %v797 = vadd.f32 %v793, 1e-05
        %v798 = vadd.f32 %v794, 1e-05
        %v799 = vrsqrt.pop %v795
        %v800 = vrsqrt.pop %v796
        %v801 = vrsqrt.pop %v797
        %v802 = vrsqrt.pop %v798
        %v803 = vmul.f32 %v771, %v799
        %v804 = vmul.f32 %v772, %v800
        %v805 = vmul.f32 %v773, %v801
        %v806 = vmul.f32 %v774, %v802
        %v807 = vpack.c.bf16 %v804, %v803
        %v808 = vpack.c.bf16 %v806, %v805
        %v809 = vld [vmem:[%s599] sm:$0xf]
        %v810 = vld [vmem:[%s599 + $0x4] sm:$0xf]
        %v811 = vld [vmem:[%s599 + $0x8] sm:$0xf]
        %v812 = vld [vmem:[%s599 + $0xc] sm:$0xf]
        %v813 = vld [vmem:[%s602] sm:$0x1]
        %v815 = vlaneseq
        %v816 = vshrl.u32 %v815, 7
        %v817 = vsub.s32 0, %v816
        %v818 = vrot.slane %v813, %v817
        %v824 = vunpack.c.l.b16 %v809
        %v825 = vunpack.c.l.b16 %v810
        %v826 = vunpack.c.l.b16 %v811
        %v827 = vunpack.c.l.b16 %v812
        %v828 = vpack.c.b16 %v825, %v824
        %v829 = vpack.c.b16 %v827, %v826
        %v833 = vsel %vm753, %v807, 0
        %v836 = vsel %vm753, %v808, 0
        %838 = vmatprep.subr.bf16.mxu0 0
        %839 = vmatpush1.bf16.msra.mxu0 %v828
        %840 = vmatprep.subr.bf16.mxu0 0
        %841 = vmatpush1.bf16.msra.mxu0 %v829
        %842 = vmatprep.subr.bf16.mxu0 0
        %843 = vmatpush1.bf16.msra.mxu0 0
        %844 = vmatprep.subr.bf16.mxu0 0
        %845 = vmatpush1.bf16.msra.mxu0 0
        %846 = vmatprep.subr.bf16.mxu0 0
        %847 = vmatpush1.bf16.msra.mxu0 0
        %848 = vmatprep.subr.bf16.mxu0 0
        %849 = vmatpush1.bf16.msra.mxu0 0
        %850 = vmatprep.subr.bf16.mxu0 0
        %851 = vmatpush1.bf16.msra.mxu0 0
        %852 = vmatprep.subr.bf16.mxu0 0
        %853 = vmatpush1.bf16.msra.mxu0 0
        %854 = vmatprep.subr.bf16.mxu0 0
        %855 = vmatpush1.bf16.msra.mxu0 0
        %856 = vmatprep.subr.bf16.mxu0 0
        %857 = vmatpush1.bf16.msra.mxu0 0
        %858 = vmatprep.subr.bf16.mxu0 0
        %859 = vmatpush1.bf16.msra.mxu0 0
        %860 = vmatprep.subr.bf16.mxu0 0
        %861 = vmatpush1.bf16.msra.mxu0 0
        %862 = vmatprep.subr.bf16.mxu0 0
        %863 = vmatpush1.bf16.msra.mxu0 0
        %864 = vmatprep.subr.bf16.mxu0 0
        %865 = vmatpush1.bf16.msra.mxu0 0
        %866 = vmatprep.subr.bf16.mxu0 0
        %867 = vmatpush1.bf16.msra.mxu0 0
        %868 = vmatprep.subr.bf16.mxu0 0
        %869 = vmatpush1.bf16.msra.mxu0 0
        %870 = vmatprep.mubr.bf16.mxu0 0
        %871 = vmatmul.mubr.bf16.gmra.mrb[0].mxu0 %v833
        %v872 = vpop.f32.mrb[0].mxu0
        %v873 = vadd.f32 %v818, %v872
        %v874 = vpop.f32.mrb[0].mxu0
        %v875 = vpop.f32.mrb[0].mxu0
        %v876 = vadd.f32 %v818, %v875
        %v877 = vpop.f32.mrb[0].mxu0
        %878 = vmatprep.mubr.bf16.mxu0 0
        %879 = vmatmul.mubr.bf16.gmra.mrb[0].mxu0 %v836
        %v880 = vpop.f32.mrb[0].mxu0
        %v881 = vadd.f32 %v818, %v880
        %v882 = vpop.f32.mrb[0].mxu0
        %v883 = vpop.f32.mrb[0].mxu0
        %v884 = vadd.f32 %v818, %v883
        %v885 = vpop.f32.mrb[0].mxu0
        %886 = vdwg.mxu0
        %v887 = vpack.c.bf16 %v876, %v873
        %v888 = vpack.c.bf16 %v884, %v881
        %891 = vrot.lane.b32.xlu0 %v887, 120
        %v892 = vpop.permute.xlu0 %891
        %893 = vrot.lane.b32.xlu0 %v888, 120
        %v894 = vpop.permute.xlu0 %893
        %895 = vrot.lane.b32.xlu0 %v887, 112
        %v896 = vpop.permute.xlu0 %895
        %897 = vrot.lane.b32.xlu0 %v888, 112
        %v898 = vpop.permute.xlu0 %897
        %899 = vrot.lane.b32.xlu0 %v887, 104
        %v900 = vpop.permute.xlu0 %899
        %901 = vrot.lane.b32.xlu0 %v888, 104
        %v902 = vpop.permute.xlu0 %901
        %903 = vrot.lane.b32.xlu0 %v887, 96
        %v904 = vpop.permute.xlu0 %903
        %vm905 = vcmask 64512
        %v907 = vsel %vm905, %v887, 0
        %v910 = vsel %vm905, %v904, 0
        %912 = vmatprep.subr.bf16.mxu0 0
        %913 = vmatpush1.bf16.xpose.msra.mxu0 %v910
        %914 = vmatprep.subr.bf16.mxu0 0
        %915 = vmatpush1.bf16.xpose.msra.mxu0 0
        %916 = vmatprep.subr.bf16.mxu0 0
        %917 = vmatpush1.bf16.xpose.msra.mxu0 0
        %918 = vmatprep.subr.bf16.mxu0 0
        %919 = vmatpush1.bf16.xpose.msra.mxu0 0
        %920 = vmatprep.subr.bf16.mxu0 0
        %921 = vmatpush1.bf16.xpose.msra.mxu0 0
        %922 = vmatprep.subr.bf16.mxu0 0
        %923 = vmatpush1.bf16.xpose.msra.mxu0 0
        %924 = vmatprep.subr.bf16.mxu0 0
        %925 = vmatpush1.bf16.xpose.msra.mxu0 0
        %926 = vmatprep.subr.bf16.mxu0 0
        %927 = vmatpush1.bf16.xpose.msra.mxu0 0
        %928 = vmatprep.subr.bf16.mxu0 0
        %929 = vmatpush1.bf16.xpose.msra.mxu0 0
        %930 = vmatprep.subr.bf16.mxu0 0
        %931 = vmatpush1.bf16.xpose.msra.mxu0 0
        %932 = vmatprep.subr.bf16.mxu0 0
        %933 = vmatpush1.bf16.xpose.msra.mxu0 0
        %934 = vmatprep.subr.bf16.mxu0 0
        %935 = vmatpush1.bf16.xpose.msra.mxu0 0
        %936 = vmatprep.subr.bf16.mxu0 0
        %937 = vmatpush1.bf16.xpose.msra.mxu0 0
        %938 = vmatprep.subr.bf16.mxu0 0
        %939 = vmatpush1.bf16.xpose.msra.mxu0 0
        %940 = vmatprep.subr.bf16.mxu0 0
        %941 = vmatpush1.bf16.xpose.msra.mxu0 0
        %942 = vmatprep.subr.bf16.mxu0 0
        %943 = vmatpush1.bf16.xpose.msra.mxu0 0
        %944 = vmatprep.mubr.bf16.mxu0 0
        %945 = vmatmul.mubr.bf16.gmra.mrb[0].mxu0 %v907
        %v946 = vpop.f32.mrb[0].mxu0
        %v947 = vadd.f32 0.0, %v946
        %v948 = vpop.f32.mrb[0].mxu0
        %v949 = vpop.f32.mrb[0].mxu0
        %v950 = vadd.f32 0.0, %v949
        %v951 = vpop.f32.mrb[0].mxu0
        %952 = vdwg.mxu0
        %953 = vrot.lane.b32.xlu0 %v888, 96
        %v954 = vpop.permute.xlu0 %953
        %v956 = vsel %vm905, %v888, 0
        %v959 = vsel %vm905, %v954, 0
        %961 = vmatprep.subr.bf16.mxu0 0
        %962 = vmatpush1.bf16.xpose.msra.mxu0 %v959
        %963 = vmatprep.subr.bf16.mxu0 0
        %964 = vmatpush1.bf16.xpose.msra.mxu0 0
        %965 = vmatprep.subr.bf16.mxu0 0
        %966 = vmatpush1.bf16.xpose.msra.mxu0 0
        %967 = vmatprep.subr.bf16.mxu0 0
        %968 = vmatpush1.bf16.xpose.msra.mxu0 0
        %969 = vmatprep.subr.bf16.mxu0 0
        %970 = vmatpush1.bf16.xpose.msra.mxu0 0
        %971 = vmatprep.subr.bf16.mxu0 0
        %972 = vmatpush1.bf16.xpose.msra.mxu0 0
        %973 = vmatprep.subr.bf16.mxu0 0
        %974 = vmatpush1.bf16.xpose.msra.mxu0 0
        %975 = vmatprep.subr.bf16.mxu0 0
        %976 = vmatpush1.bf16.xpose.msra.mxu0 0
        %977 = vmatprep.subr.bf16.mxu0 0
        %978 = vmatpush1.bf16.xpose.msra.mxu0 0
        %979 = vmatprep.subr.bf16.mxu0 0
        %980 = vmatpush1.bf16.xpose.msra.mxu0 0
        %981 = vmatprep.subr.bf16.mxu0 0
        %982 = vmatpush1.bf16.xpose.msra.mxu0 0
        %983 = vmatprep.subr.bf16.mxu0 0
        %984 = vmatpush1.bf16.xpose.msra.mxu0 0
        %985 = vmatprep.subr.bf16.mxu0 0
        %986 = vmatpush1.bf16.xpose.msra.mxu0 0
        %987 = vmatprep.subr.bf16.mxu0 0
        %988 = vmatpush1.bf16.xpose.msra.mxu0 0
        %989 = vmatprep.subr.bf16.mxu0 0
        %990 = vmatpush1.bf16.xpose.msra.mxu0 0
        %991 = vmatprep.subr.bf16.mxu0 0
        %992 = vmatpush1.bf16.xpose.msra.mxu0 0
        %993 = vmatprep.mubr.bf16.mxu0 0
        %994 = vmatmul.mubr.bf16.gmra.mrb[0].mxu0 %v956
        %v995 = vpop.f32.mrb[0].mxu0
        %v996 = vadd.f32 0.0, %v995
        %v997 = vpop.f32.mrb[0].mxu0
        %v998 = vpop.f32.mrb[0].mxu0
        %v999 = vadd.f32 0.0, %v998
        %v1000 = vpop.f32.mrb[0].mxu0
        %1001 = vdwg.mxu0
        %1002 = vrot.lane.b32.xlu0 %v892, 96
        %v1003 = vpop.permute.xlu0 %1002
        %v1005 = vsel %vm905, %v892, 0
        %v1008 = vsel %vm905, %v1003, 0
        %1010 = vmatprep.subr.bf16.mxu0 0
        %1011 = vmatpush1.bf16.xpose.msra.mxu0 %v1008
        %1012 = vmatprep.subr.bf16.mxu0 0
        %1013 = vmatpush1.bf16.xpose.msra.mxu0 0
        %1014 = vmatprep.subr.bf16.mxu0 0
        %1015 = vmatpush1.bf16.xpose.msra.mxu0 0
        %1016 = vmatprep.subr.bf16.mxu0 0
        %1017 = vmatpush1.bf16.xpose.msra.mxu0 0
        %1018 = vmatprep.subr.bf16.mxu0 0
        %1019 = vmatpush1.bf16.xpose.msra.mxu0 0
        %1020 = vmatprep.subr.bf16.mxu0 0
        %1021 = vmatpush1.bf16.xpose.msra.mxu0 0
        %1022 = vmatprep.subr.bf16.mxu0 0
        %1023 = vmatpush1.bf16.xpose.msra.mxu0 0
        %1024 = vmatprep.subr.bf16.mxu0 0
        %1025 = vmatpush1.bf16.xpose.msra.mxu0 0
        %1026 = vmatprep.subr.bf16.mxu0 0
        %1027 = vmatpush1.bf16.xpose.msra.mxu0 0
        %1028 = vmatprep.subr.bf16.mxu0 0
        %1029 = vmatpush1.bf16.xpose.msra.mxu0 0
        %1030 = vmatprep.subr.bf16.mxu0 0
        %1031 = vmatpush1.bf16.xpose.msra.mxu0 0
        %1032 = vmatprep.subr.bf16.mxu0 0
        %1033 = vmatpush1.bf16.xpose.msra.mxu0 0
        %1034 = vmatprep.subr.bf16.mxu0 0
        %1035 = vmatpush1.bf16.xpose.msra.mxu0 0
        %1036 = vmatprep.subr.bf16.mxu0 0
        %1037 = vmatpush1.bf16.xpose.msra.mxu0 0
        %1038 = vmatprep.subr.bf16.mxu0 0
        %1039 = vmatpush1.bf16.xpose.msra.mxu0 0
        %1040 = vmatprep.subr.bf16.mxu0 0
        %1041 = vmatpush1.bf16.xpose.msra.mxu0 0
        %1042 = vmatprep.mubr.bf16.mxu0 0
        %1043 = vmatmul.mubr.bf16.gmra.mrb[0].mxu0 %v1005
        %v1044 = vpop.f32.mrb[0].mxu0
        %v1045 = vadd.f32 0.0, %v1044
        %v1046 = vpop.f32.mrb[0].mxu0
        %v1047 = vpop.f32.mrb[0].mxu0
        %v1048 = vadd.f32 0.0, %v1047
        %v1049 = vpop.f32.mrb[0].mxu0
        %1050 = vdwg.mxu0
        %1051 = vrot.lane.b32.xlu0 %v894, 96
        %v1052 = vpop.permute.xlu0 %1051
        %v1054 = vsel %vm905, %v894, 0
        %v1057 = vsel %vm905, %v1052, 0
        %1059 = vmatprep.subr.bf16.mxu0 0
        %1060 = vmatpush1.bf16.xpose.msra.mxu0 %v1057
        %1061 = vmatprep.subr.bf16.mxu0 0
        %1062 = vmatpush1.bf16.xpose.msra.mxu0 0
        %1063 = vmatprep.subr.bf16.mxu0 0
        %1064 = vmatpush1.bf16.xpose.msra.mxu0 0
        %1065 = vmatprep.subr.bf16.mxu0 0
        %1066 = vmatpush1.bf16.xpose.msra.mxu0 0
        %1067 = vmatprep.subr.bf16.mxu0 0
        %1068 = vmatpush1.bf16.xpose.msra.mxu0 0
        %1069 = vmatprep.subr.bf16.mxu0 0
        %1070 = vmatpush1.bf16.xpose.msra.mxu0 0
        %1071 = vmatprep.subr.bf16.mxu0 0
        %1072 = vmatpush1.bf16.xpose.msra.mxu0 0
        %1073 = vmatprep.subr.bf16.mxu0 0
        %1074 = vmatpush1.bf16.xpose.msra.mxu0 0
        %1075 = vmatprep.subr.bf16.mxu0 0
        %1076 = vmatpush1.bf16.xpose.msra.mxu0 0
        %1077 = vmatprep.subr.bf16.mxu0 0
        %1078 = vmatpush1.bf16.xpose.msra.mxu0 0
        %1079 = vmatprep.subr.bf16.mxu0 0
        %1080 = vmatpush1.bf16.xpose.msra.mxu0 0
        %1081 = vmatprep.subr.bf16.mxu0 0
        %1082 = vmatpush1.bf16.xpose.msra.mxu0 0
        %1083 = vmatprep.subr.bf16.mxu0 0
        %1084 = vmatpush1.bf16.xpose.msra.mxu0 0
        %1085 = vmatprep.subr.bf16.mxu0 0
        %1086 = vmatpush1.bf16.xpose.msra.mxu0 0
        %1087 = vmatprep.subr.bf16.mxu0 0
        %1088 = vmatpush1.bf16.xpose.msra.mxu0 0
        %1089 = vmatprep.subr.bf16.mxu0 0
        %1090 = vmatpush1.bf16.xpose.msra.mxu0 0
        %1091 = vmatprep.mubr.bf16.mxu0 0
        %1092 = vmatmul.mubr.bf16.gmra.mrb[0].mxu0 %v1054
        %v1093 = vpop.f32.mrb[0].mxu0
        %v1094 = vadd.f32 0.0, %v1093
        %v1095 = vpop.f32.mrb[0].mxu0
        %v1096 = vpop.f32.mrb[0].mxu0
        %v1097 = vadd.f32 0.0, %v1096
        %v1098 = vpop.f32.mrb[0].mxu0
        %1099 = vdwg.mxu0
        %1100 = vrot.lane.b32.xlu0 %v896, 96
        %v1101 = vpop.permute.xlu0 %1100
        %v1103 = vsel %vm905, %v896, 0
        %v1106 = vsel %vm905, %v1101, 0
        %1108 = vmatprep.subr.bf16.mxu0 0
        %1109 = vmatpush1.bf16.xpose.msra.mxu0 %v1106
        %1110 = vmatprep.subr.bf16.mxu0 0
        %1111 = vmatpush1.bf16.xpose.msra.mxu0 0
        %1112 = vmatprep.subr.bf16.mxu0 0
        %1113 = vmatpush1.bf16.xpose.msra.mxu0 0
        %1114 = vmatprep.subr.bf16.mxu0 0
        %1115 = vmatpush1.bf16.xpose.msra.mxu0 0
        %1116 = vmatprep.subr.bf16.mxu0 0
        %1117 = vmatpush1.bf16.xpose.msra.mxu0 0
        %1118 = vmatprep.subr.bf16.mxu0 0
        %1119 = vmatpush1.bf16.xpose.msra.mxu0 0
        %1120 = vmatprep.subr.bf16.mxu0 0
        %1121 = vmatpush1.bf16.xpose.msra.mxu0 0
        %1122 = vmatprep.subr.bf16.mxu0 0
        %1123 = vmatpush1.bf16.xpose.msra.mxu0 0
        %1124 = vmatprep.subr.bf16.mxu0 0
        %1125 = vmatpush1.bf16.xpose.msra.mxu0 0
        %1126 = vmatprep.subr.bf16.mxu0 0
        %1127 = vmatpush1.bf16.xpose.msra.mxu0 0
        %1128 = vmatprep.subr.bf16.mxu0 0
        %1129 = vmatpush1.bf16.xpose.msra.mxu0 0
        %1130 = vmatprep.subr.bf16.mxu0 0
        %1131 = vmatpush1.bf16.xpose.msra.mxu0 0
        %1132 = vmatprep.subr.bf16.mxu0 0
        %1133 = vmatpush1.bf16.xpose.msra.mxu0 0
        %1134 = vmatprep.subr.bf16.mxu0 0
        %1135 = vmatpush1.bf16.xpose.msra.mxu0 0
        %1136 = vmatprep.subr.bf16.mxu0 0
        %1137 = vmatpush1.bf16.xpose.msra.mxu0 0
        %1138 = vmatprep.subr.bf16.mxu0 0
        %1139 = vmatpush1.bf16.xpose.msra.mxu0 0
        %1140 = vmatprep.mubr.bf16.mxu0 0
        %1141 = vmatmul.mubr.bf16.gmra.mrb[0].mxu0 %v1103
        %v1142 = vpop.f32.mrb[0].mxu0
        %v1143 = vadd.f32 0.0, %v1142
        %v1144 = vpop.f32.mrb[0].mxu0
        %v1145 = vpop.f32.mrb[0].mxu0
        %v1146 = vadd.f32 0.0, %v1145
        %v1147 = vpop.f32.mrb[0].mxu0
        %1148 = vdwg.mxu0
        %1149 = vrot.lane.b32.xlu0 %v898, 96
        %v1150 = vpop.permute.xlu0 %1149
        %v1152 = vsel %vm905, %v898, 0
        %v1155 = vsel %vm905, %v1150, 0
        %1157 = vmatprep.subr.bf16.mxu0 0
        %1158 = vmatpush1.bf16.xpose.msra.mxu0 %v1155
        %1159 = vmatprep.subr.bf16.mxu0 0
        %1160 = vmatpush1.bf16.xpose.msra.mxu0 0
        %1161 = vmatprep.subr.bf16.mxu0 0
        %1162 = vmatpush1.bf16.xpose.msra.mxu0 0
        %1163 = vmatprep.subr.bf16.mxu0 0
        %1164 = vmatpush1.bf16.xpose.msra.mxu0 0
        %1165 = vmatprep.subr.bf16.mxu0 0
        %1166 = vmatpush1.bf16.xpose.msra.mxu0 0
        %1167 = vmatprep.subr.bf16.mxu0 0
        %1168 = vmatpush1.bf16.xpose.msra.mxu0 0
        %1169 = vmatprep.subr.bf16.mxu0 0
        %1170 = vmatpush1.bf16.xpose.msra.mxu0 0
        %1171 = vmatprep.subr.bf16.mxu0 0
        %1172 = vmatpush1.bf16.xpose.msra.mxu0 0
        %1173 = vmatprep.subr.bf16.mxu0 0
        %1174 = vmatpush1.bf16.xpose.msra.mxu0 0
        %1175 = vmatprep.subr.bf16.mxu0 0
        %1176 = vmatpush1.bf16.xpose.msra.mxu0 0
        %1177 = vmatprep.subr.bf16.mxu0 0
        %1178 = vmatpush1.bf16.xpose.msra.mxu0 0
        %1179 = vmatprep.subr.bf16.mxu0 0
        %1180 = vmatpush1.bf16.xpose.msra.mxu0 0
        %1181 = vmatprep.subr.bf16.mxu0 0
        %1182 = vmatpush1.bf16.xpose.msra.mxu0 0
        %1183 = vmatprep.subr.bf16.mxu0 0
        %1184 = vmatpush1.bf16.xpose.msra.mxu0 0
        %1185 = vmatprep.subr.bf16.mxu0 0
        %1186 = vmatpush1.bf16.xpose.msra.mxu0 0
        %1187 = vmatprep.subr.bf16.mxu0 0
        %1188 = vmatpush1.bf16.xpose.msra.mxu0 0
        %1189 = vmatprep.mubr.bf16.mxu0 0
        %1190 = vmatmul.mubr.bf16.gmra.mrb[0].mxu0 %v1152
        %v1191 = vpop.f32.mrb[0].mxu0
        %v1192 = vadd.f32 0.0, %v1191
        %v1193 = vpop.f32.mrb[0].mxu0
        %v1194 = vpop.f32.mrb[0].mxu0
        %v1195 = vadd.f32 0.0, %v1194
        %v1196 = vpop.f32.mrb[0].mxu0
        %1197 = vdwg.mxu0
        %1198 = vrot.lane.b32.xlu0 %v900, 96
        %v1199 = vpop.permute.xlu0 %1198
        %v1201 = vsel %vm905, %v900, 0
        %v1204 = vsel %vm905, %v1199, 0
        %1206 = vmatprep.subr.bf16.mxu0 0
        %1207 = vmatpush1.bf16.xpose.msra.mxu0 %v1204
        %1208 = vmatprep.subr.bf16.mxu0 0
        %1209 = vmatpush1.bf16.xpose.msra.mxu0 0
        %1210 = vmatprep.subr.bf16.mxu0 0
        %1211 = vmatpush1.bf16.xpose.msra.mxu0 0
        %1212 = vmatprep.subr.bf16.mxu0 0
        %1213 = vmatpush1.bf16.xpose.msra.mxu0 0
        %1214 = vmatprep.subr.bf16.mxu0 0
        %1215 = vmatpush1.bf16.xpose.msra.mxu0 0
        %1216 = vmatprep.subr.bf16.mxu0 0
        %1217 = vmatpush1.bf16.xpose.msra.mxu0 0
        %1218 = vmatprep.subr.bf16.mxu0 0
        %1219 = vmatpush1.bf16.xpose.msra.mxu0 0
        %1220 = vmatprep.subr.bf16.mxu0 0
        %1221 = vmatpush1.bf16.xpose.msra.mxu0 0
        %1222 = vmatprep.subr.bf16.mxu0 0
        %1223 = vmatpush1.bf16.xpose.msra.mxu0 0
        %1224 = vmatprep.subr.bf16.mxu0 0
        %1225 = vmatpush1.bf16.xpose.msra.mxu0 0
        %1226 = vmatprep.subr.bf16.mxu0 0
        %1227 = vmatpush1.bf16.xpose.msra.mxu0 0
        %1228 = vmatprep.subr.bf16.mxu0 0
        %1229 = vmatpush1.bf16.xpose.msra.mxu0 0
        %1230 = vmatprep.subr.bf16.mxu0 0
        %1231 = vmatpush1.bf16.xpose.msra.mxu0 0
        %1232 = vmatprep.subr.bf16.mxu0 0
        %1233 = vmatpush1.bf16.xpose.msra.mxu0 0
        %1234 = vmatprep.subr.bf16.mxu0 0
        %1235 = vmatpush1.bf16.xpose.msra.mxu0 0
        %1236 = vmatprep.subr.bf16.mxu0 0
        %1237 = vmatpush1.bf16.xpose.msra.mxu0 0
        %1238 = vmatprep.mubr.bf16.mxu0 0
        %1239 = vmatmul.mubr.bf16.gmra.mrb[0].mxu0 %v1201
        %v1240 = vpop.f32.mrb[0].mxu0
        %v1241 = vadd.f32 0.0, %v1240
        %v1242 = vpop.f32.mrb[0].mxu0
        %v1243 = vpop.f32.mrb[0].mxu0
        %v1244 = vadd.f32 0.0, %v1243
        %v1245 = vpop.f32.mrb[0].mxu0
        %1246 = vdwg.mxu0
        %1247 = vrot.lane.b32.xlu0 %v902, 96
        %v1248 = vpop.permute.xlu0 %1247
        %v1250 = vsel %vm905, %v902, 0
        %v1253 = vsel %vm905, %v1248, 0
        %1255 = vmatprep.subr.bf16.mxu0 0
        %1256 = vmatpush1.bf16.xpose.msra.mxu0 %v1253
        %1257 = vmatprep.subr.bf16.mxu0 0
        %1258 = vmatpush1.bf16.xpose.msra.mxu0 0
        %1259 = vmatprep.subr.bf16.mxu0 0
        %1260 = vmatpush1.bf16.xpose.msra.mxu0 0
        %1261 = vmatprep.subr.bf16.mxu0 0
        %1262 = vmatpush1.bf16.xpose.msra.mxu0 0
        %1263 = vmatprep.subr.bf16.mxu0 0
        %1264 = vmatpush1.bf16.xpose.msra.mxu0 0
        %1265 = vmatprep.subr.bf16.mxu0 0
        %1266 = vmatpush1.bf16.xpose.msra.mxu0 0
        %1267 = vmatprep.subr.bf16.mxu0 0
        %1268 = vmatpush1.bf16.xpose.msra.mxu0 0
        %1269 = vmatprep.subr.bf16.mxu0 0
        %1270 = vmatpush1.bf16.xpose.msra.mxu0 0
        %1271 = vmatprep.subr.bf16.mxu0 0
        %1272 = vmatpush1.bf16.xpose.msra.mxu0 0
        %1273 = vmatprep.subr.bf16.mxu0 0
        %1274 = vmatpush1.bf16.xpose.msra.mxu0 0
        %1275 = vmatprep.subr.bf16.mxu0 0
        %1276 = vmatpush1.bf16.xpose.msra.mxu0 0
        %1277 = vmatprep.subr.bf16.mxu0 0
        %1278 = vmatpush1.bf16.xpose.msra.mxu0 0
        %1279 = vmatprep.subr.bf16.mxu0 0
        %1280 = vmatpush1.bf16.xpose.msra.mxu0 0
        %1281 = vmatprep.subr.bf16.mxu0 0
        %1282 = vmatpush1.bf16.xpose.msra.mxu0 0
        %1283 = vmatprep.subr.bf16.mxu0 0
        %1284 = vmatpush1.bf16.xpose.msra.mxu0 0
        %1285 = vmatprep.subr.bf16.mxu0 0
        %1286 = vmatpush1.bf16.xpose.msra.mxu0 0
        %1287 = vmatprep.mubr.bf16.mxu0 0
        %1288 = vmatmul.mubr.bf16.gmra.mrb[0].mxu0 %v1250
        %v1289 = vpop.f32.mrb[0].mxu0
        %v1290 = vadd.f32 0.0, %v1289
        %v1291 = vpop.f32.mrb[0].mxu0
        %v1292 = vpop.f32.mrb[0].mxu0
        %v1293 = vadd.f32 0.0, %v1292
        %v1294 = vpop.f32.mrb[0].mxu0
        %1295 = vdwg.mxu0
        %vm1296 = vcmask 130048
        %v1297 = vsel %vm1296, %v947, -inf
        %1298 = vmax.xlane.f32.xlu0 %v1297
        %v1299 = vpop.xlane.xlu0 %1298
        %v1300 = vsel %vm1296, %v950, -inf
        %1301 = vmax.xlane.f32.xlu0 %v1300
        %v1302 = vpop.xlane.xlu0 %1301
        %v1303 = vsel %vm1296, %v996, -inf
        %1304 = vmax.xlane.f32.xlu0 %v1303
        %v1305 = vpop.xlane.xlu0 %1304
        %v1306 = vsel %vm1296, %v999, -inf
        %1307 = vmax.xlane.f32.xlu0 %v1306
        %v1308 = vpop.xlane.xlu0 %1307
        %v1309 = vsel %vm1296, %v1045, -inf
        %1310 = vmax.xlane.f32.xlu0 %v1309
        %v1311 = vpop.xlane.xlu0 %1310
        %v1312 = vsel %vm1296, %v1048, -inf
        %1313 = vmax.xlane.f32.xlu0 %v1312
        %v1314 = vpop.xlane.xlu0 %1313
        %v1315 = vsel %vm1296, %v1094, -inf
        %1316 = vmax.xlane.f32.xlu0 %v1315
        %v1317 = vpop.xlane.xlu0 %1316
        %v1318 = vsel %vm1296, %v1097, -inf
        %1319 = vmax.xlane.f32.xlu0 %v1318
        %v1320 = vpop.xlane.xlu0 %1319
        %v1321 = vsel %vm1296, %v1143, -inf
        %1322 = vmax.xlane.f32.xlu0 %v1321
        %v1323 = vpop.xlane.xlu0 %1322
        %v1324 = vsel %vm1296, %v1146, -inf
        %1325 = vmax.xlane.f32.xlu0 %v1324
        %v1326 = vpop.xlane.xlu0 %1325
        %v1327 = vsel %vm1296, %v1192, -inf
        %1328 = vmax.xlane.f32.xlu0 %v1327
        %v1329 = vpop.xlane.xlu0 %1328
        %v1330 = vsel %vm1296, %v1195, -inf
        %1331 = vmax.xlane.f32.xlu0 %v1330
        %v1332 = vpop.xlane.xlu0 %1331
        %v1333 = vsel %vm1296, %v1241, -inf
        %1334 = vmax.xlane.f32.xlu0 %v1333
        %v1335 = vpop.xlane.xlu0 %1334
        %v1336 = vsel %vm1296, %v1244, -inf
        %1337 = vmax.xlane.f32.xlu0 %v1336
        %v1338 = vpop.xlane.xlu0 %1337
        %v1339 = vsel %vm1296, %v1290, -inf
        %1340 = vmax.xlane.f32.xlu0 %v1339
        %v1341 = vpop.xlane.xlu0 %1340
        %v1342 = vsel %vm1296, %v1293, -inf
        %1343 = vmax.xlane.f32.xlu0 %v1342
        %v1344 = vpop.xlane.xlu0 %1343
        %v1345 = vsub.f32 %v947, %v1299
        %v1346 = vsub.f32 %v950, %v1302
        %v1347 = vsub.f32 %v996, %v1305
        %v1348 = vsub.f32 %v999, %v1308
        %v1349 = vsub.f32 %v1045, %v1311
        %v1350 = vsub.f32 %v1048, %v1314
        %v1351 = vsub.f32 %v1094, %v1317
        %v1352 = vsub.f32 %v1097, %v1320
        %v1353 = vsub.f32 %v1143, %v1323
        %v1354 = vsub.f32 %v1146, %v1326
        %v1355 = vsub.f32 %v1192, %v1329
        %v1356 = vsub.f32 %v1195, %v1332
        %v1357 = vsub.f32 %v1241, %v1335
        %v1358 = vsub.f32 %v1244, %v1338
        %v1359 = vsub.f32 %v1290, %v1341
        %v1360 = vsub.f32 %v1293, %v1344
        %v1361 = vmul.f32 %v1345, 1.442695
        %v1362 = vpow.pop %v1361
        %v1363 = vmul.f32 %v1346, 1.442695
        %v1364 = vpow.pop %v1363
        %v1365 = vmul.f32 %v1347, 1.442695
        %v1366 = vpow.pop %v1365
        %v1367 = vmul.f32 %v1348, 1.442695
        %v1368 = vpow.pop %v1367
        %v1369 = vmul.f32 %v1349, 1.442695
        %v1370 = vpow.pop %v1369
        %v1371 = vmul.f32 %v1350, 1.442695
        %v1372 = vpow.pop %v1371
        %v1373 = vmul.f32 %v1351, 1.442695
        %v1374 = vpow.pop %v1373
        %v1375 = vmul.f32 %v1352, 1.442695
        %v1376 = vpow.pop %v1375
        %v1377 = vmul.f32 %v1353, 1.442695
        %v1378 = vpow.pop %v1377
        %v1379 = vmul.f32 %v1354, 1.442695
        %v1380 = vpow.pop %v1379
        %v1381 = vmul.f32 %v1355, 1.442695
        %v1382 = vpow.pop %v1381
        %v1383 = vmul.f32 %v1356, 1.442695
        %v1384 = vpow.pop %v1383
        %v1385 = vmul.f32 %v1357, 1.442695
        %v1386 = vpow.pop %v1385
        %v1387 = vmul.f32 %v1358, 1.442695
        %v1388 = vpow.pop %v1387
        %v1389 = vmul.f32 %v1359, 1.442695
        %v1390 = vpow.pop %v1389
        %v1391 = vmul.f32 %v1360, 1.442695
        %v1392 = vpow.pop %v1391
        %v1393 = vsel %vm1296, %v1362, 0.0
        %1394 = vadd.xlane.f32.xlu0 %v1393
        %v1395 = vpop.xlane.xlu0 %1394
        %v1396 = vsel %vm1296, %v1364, 0.0
        %1397 = vadd.xlane.f32.xlu0 %v1396
        %v1398 = vpop.xlane.xlu0 %1397
        %v1399 = vsel %vm1296, %v1366, 0.0
        %1400 = vadd.xlane.f32.xlu0 %v1399
        %v1401 = vpop.xlane.xlu0 %1400
        %v1402 = vsel %vm1296, %v1368, 0.0
        %1403 = vadd.xlane.f32.xlu0 %v1402
        %v1404 = vpop.xlane.xlu0 %1403
        %v1405 = vsel %vm1296, %v1370, 0.0
        %1406 = vadd.xlane.f32.xlu0 %v1405
        %v1407 = vpop.xlane.xlu0 %1406
        %v1408 = vsel %vm1296, %v1372, 0.0
        %1409 = vadd.xlane.f32.xlu0 %v1408
        %v1410 = vpop.xlane.xlu0 %1409
        %v1411 = vsel %vm1296, %v1374, 0.0
        %1412 = vadd.xlane.f32.xlu0 %v1411
        %v1413 = vpop.xlane.xlu0 %1412
        %v1414 = vsel %vm1296, %v1376, 0.0
        %1415 = vadd.xlane.f32.xlu0 %v1414
        %v1416 = vpop.xlane.xlu0 %1415
        %v1417 = vsel %vm1296, %v1378, 0.0
        %1418 = vadd.xlane.f32.xlu0 %v1417
        %v1419 = vpop.xlane.xlu0 %1418
        %v1420 = vsel %vm1296, %v1380, 0.0
        %1421 = vadd.xlane.f32.xlu0 %v1420
        %v1422 = vpop.xlane.xlu0 %1421
        %v1423 = vsel %vm1296, %v1382, 0.0
        %1424 = vadd.xlane.f32.xlu0 %v1423
        %v1425 = vpop.xlane.xlu0 %1424
        %v1426 = vsel %vm1296, %v1384, 0.0
        %1427 = vadd.xlane.f32.xlu0 %v1426
        %v1428 = vpop.xlane.xlu0 %1427
        %v1429 = vsel %vm1296, %v1386, 0.0
        %1430 = vadd.xlane.f32.xlu0 %v1429
        %v1431 = vpop.xlane.xlu0 %1430
        %v1432 = vsel %vm1296, %v1388, 0.0
        %1433 = vadd.xlane.f32.xlu0 %v1432
        %v1434 = vpop.xlane.xlu0 %1433
        %v1435 = vsel %vm1296, %v1390, 0.0
        %1436 = vadd.xlane.f32.xlu0 %v1435
        %v1437 = vpop.xlane.xlu0 %1436
        %v1438 = vsel %vm1296, %v1392, 0.0
        %1439 = vadd.xlane.f32.xlu0 %v1438
        %v1440 = vpop.xlane.xlu0 %1439
        %v1441 = vrcp.pop %v1395
        %v1442 = vrcp.pop %v1398
        %v1443 = vrcp.pop %v1401
        %v1444 = vrcp.pop %v1404
        %v1445 = vrcp.pop %v1407
        %v1446 = vrcp.pop %v1410
        %v1447 = vrcp.pop %v1413
        %v1448 = vrcp.pop %v1416
        %v1449 = vrcp.pop %v1419
        %v1450 = vrcp.pop %v1422
        %v1451 = vrcp.pop %v1425
        %v1452 = vrcp.pop %v1428
        %v1453 = vrcp.pop %v1431
        %v1454 = vrcp.pop %v1434
        %v1455 = vrcp.pop %v1437
        %v1456 = vrcp.pop %v1440
        %v1457 = vmul.f32 %v1362, %v1441
        %v1458 = vmul.f32 %v1364, %v1442
        %v1459 = vmul.f32 %v1366, %v1443
        %v1460 = vmul.f32 %v1368, %v1444
        %v1461 = vmul.f32 %v1370, %v1445
        %v1462 = vmul.f32 %v1372, %v1446
        %v1463 = vmul.f32 %v1374, %v1447
        %v1464 = vmul.f32 %v1376, %v1448
        %v1465 = vmul.f32 %v1378, %v1449
        %v1466 = vmul.f32 %v1380, %v1450
        %v1467 = vmul.f32 %v1382, %v1451
        %v1468 = vmul.f32 %v1384, %v1452
        %v1469 = vmul.f32 %v1386, %v1453
        %v1470 = vmul.f32 %v1388, %v1454
        %v1471 = vmul.f32 %v1390, %v1455
        %v1472 = vmul.f32 %v1392, %v1456
        %v1473 = vpack.c.bf16 %v1458, %v1457
        %v1474 = vpack.c.bf16 %v1460, %v1459
        %v1475 = vpack.c.bf16 %v1462, %v1461
        %v1476 = vpack.c.bf16 %v1464, %v1463
        %v1477 = vpack.c.bf16 %v1466, %v1465
        %v1478 = vpack.c.bf16 %v1468, %v1467
        %v1479 = vpack.c.bf16 %v1470, %v1469
        %v1480 = vpack.c.bf16 %v1472, %v1471
        %1481 = vrot.lane.b32.xlu0 %v887, 64
        %v1482 = vpop.permute.xlu0 %1481
        %v1485 = vsel %vm1296, %v1473, 0
        %1487 = vmatprep.subr.bf16.mxu0 0
        %1488 = vmatpush1.bf16.msra.mxu0 %v1482
        %1489 = vmatprep.subr.bf16.mxu0 0
        %1490 = vmatpush1.bf16.msra.mxu0 0
        %1491 = vmatprep.subr.bf16.mxu0 0
        %1492 = vmatpush1.bf16.msra.mxu0 0
        %1493 = vmatprep.subr.bf16.mxu0 0
        %1494 = vmatpush1.bf16.msra.mxu0 0
        %1495 = vmatprep.subr.bf16.mxu0 0
        %1496 = vmatpush1.bf16.msra.mxu0 0
        %1497 = vmatprep.subr.bf16.mxu0 0
        %1498 = vmatpush1.bf16.msra.mxu0 0
        %1499 = vmatprep.subr.bf16.mxu0 0
        %1500 = vmatpush1.bf16.msra.mxu0 0
        %1501 = vmatprep.subr.bf16.mxu0 0
        %1502 = vmatpush1.bf16.msra.mxu0 0
        %1503 = vmatprep.subr.bf16.mxu0 0
        %1504 = vmatpush1.bf16.msra.mxu0 0
        %1505 = vmatprep.subr.bf16.mxu0 0
        %1506 = vmatpush1.bf16.msra.mxu0 0
        %1507 = vmatprep.subr.bf16.mxu0 0
        %1508 = vmatpush1.bf16.msra.mxu0 0
        %1509 = vmatprep.subr.bf16.mxu0 0
        %1510 = vmatpush1.bf16.msra.mxu0 0
        %1511 = vmatprep.subr.bf16.mxu0 0
        %1512 = vmatpush1.bf16.msra.mxu0 0
        %1513 = vmatprep.subr.bf16.mxu0 0
        %1514 = vmatpush1.bf16.msra.mxu0 0
        %1515 = vmatprep.subr.bf16.mxu0 0
        %1516 = vmatpush1.bf16.msra.mxu0 0
        %1517 = vmatprep.subr.bf16.mxu0 0
        %1518 = vmatpush1.bf16.msra.mxu0 0
        %1519 = vmatprep.mubr.bf16.mxu0 0
        %1520 = vmatmul.mubr.bf16.gmra.mrb[0].mxu0 %v1485
        %v1521 = vpop.f32.mrb[0].mxu0
        %v1522 = vadd.f32 0.0, %v1521
        %v1523 = vpop.f32.mrb[0].mxu0
        %v1524 = vpop.f32.mrb[0].mxu0
        %v1525 = vadd.f32 0.0, %v1524
        %v1526 = vpop.f32.mrb[0].mxu0
        %1527 = vdwg.mxu0
        %1528 = vrot.lane.b32.xlu0 %v888, 64
        %v1529 = vpop.permute.xlu0 %1528
        %v1532 = vsel %vm1296, %v1474, 0
        %1534 = vmatprep.subr.bf16.mxu0 0
        %1535 = vmatpush1.bf16.msra.mxu0 %v1529
        %1536 = vmatprep.subr.bf16.mxu0 0
        %1537 = vmatpush1.bf16.msra.mxu0 0
        %1538 = vmatprep.subr.bf16.mxu0 0
        %1539 = vmatpush1.bf16.msra.mxu0 0
        %1540 = vmatprep.subr.bf16.mxu0 0
        %1541 = vmatpush1.bf16.msra.mxu0 0
        %1542 = vmatprep.subr.bf16.mxu0 0
        %1543 = vmatpush1.bf16.msra.mxu0 0
        %1544 = vmatprep.subr.bf16.mxu0 0
        %1545 = vmatpush1.bf16.msra.mxu0 0
        %1546 = vmatprep.subr.bf16.mxu0 0
        %1547 = vmatpush1.bf16.msra.mxu0 0
        %1548 = vmatprep.subr.bf16.mxu0 0
        %1549 = vmatpush1.bf16.msra.mxu0 0
        %1550 = vmatprep.subr.bf16.mxu0 0
        %1551 = vmatpush1.bf16.msra.mxu0 0
        %1552 = vmatprep.subr.bf16.mxu0 0
        %1553 = vmatpush1.bf16.msra.mxu0 0
        %1554 = vmatprep.subr.bf16.mxu0 0
        %1555 = vmatpush1.bf16.msra.mxu0 0
        %1556 = vmatprep.subr.bf16.mxu0 0
        %1557 = vmatpush1.bf16.msra.mxu0 0
        %1558 = vmatprep.subr.bf16.mxu0 0
        %1559 = vmatpush1.bf16.msra.mxu0 0
        %1560 = vmatprep.subr.bf16.mxu0 0
        %1561 = vmatpush1.bf16.msra.mxu0 0
        %1562 = vmatprep.subr.bf16.mxu0 0
        %1563 = vmatpush1.bf16.msra.mxu0 0
        %1564 = vmatprep.subr.bf16.mxu0 0
        %1565 = vmatpush1.bf16.msra.mxu0 0
        %1566 = vmatprep.mubr.bf16.mxu0 0
        %1567 = vmatmul.mubr.bf16.gmra.mrb[0].mxu0 %v1532
        %v1568 = vpop.f32.mrb[0].mxu0
        %v1569 = vadd.f32 0.0, %v1568
        %v1570 = vpop.f32.mrb[0].mxu0
        %v1571 = vpop.f32.mrb[0].mxu0
        %v1572 = vadd.f32 0.0, %v1571
        %v1573 = vpop.f32.mrb[0].mxu0
        %1574 = vdwg.mxu0
        %1575 = vrot.lane.b32.xlu0 %v892, 64
        %v1576 = vpop.permute.xlu0 %1575
        %v1579 = vsel %vm1296, %v1475, 0
        %1581 = vmatprep.subr.bf16.mxu0 0
        %1582 = vmatpush1.bf16.msra.mxu0 %v1576
        %1583 = vmatprep.subr.bf16.mxu0 0
        %1584 = vmatpush1.bf16.msra.mxu0 0
        %1585 = vmatprep.subr.bf16.mxu0 0
        %1586 = vmatpush1.bf16.msra.mxu0 0
        %1587 = vmatprep.subr.bf16.mxu0 0
        %1588 = vmatpush1.bf16.msra.mxu0 0
        %1589 = vmatprep.subr.bf16.mxu0 0
        %1590 = vmatpush1.bf16.msra.mxu0 0
        %1591 = vmatprep.subr.bf16.mxu0 0
        %1592 = vmatpush1.bf16.msra.mxu0 0
        %1593 = vmatprep.subr.bf16.mxu0 0
        %1594 = vmatpush1.bf16.msra.mxu0 0
        %1595 = vmatprep.subr.bf16.mxu0 0
        %1596 = vmatpush1.bf16.msra.mxu0 0
        %1597 = vmatprep.subr.bf16.mxu0 0
        %1598 = vmatpush1.bf16.msra.mxu0 0
        %1599 = vmatprep.subr.bf16.mxu0 0
        %1600 = vmatpush1.bf16.msra.mxu0 0
        %1601 = vmatprep.subr.bf16.mxu0 0
        %1602 = vmatpush1.bf16.msra.mxu0 0
        %1603 = vmatprep.subr.bf16.mxu0 0
        %1604 = vmatpush1.bf16.msra.mxu0 0
        %1605 = vmatprep.subr.bf16.mxu0 0
        %1606 = vmatpush1.bf16.msra.mxu0 0
        %1607 = vmatprep.subr.bf16.mxu0 0
        %1608 = vmatpush1.bf16.msra.mxu0 0
        %1609 = vmatprep.subr.bf16.mxu0 0
        %1610 = vmatpush1.bf16.msra.mxu0 0
        %1611 = vmatprep.subr.bf16.mxu0 0
        %1612 = vmatpush1.bf16.msra.mxu0 0
        %1613 = vmatprep.mubr.bf16.mxu0 0
        %1614 = vmatmul.mubr.bf16.gmra.mrb[0].mxu0 %v1579
        %v1615 = vpop.f32.mrb[0].mxu0
        %v1616 = vadd.f32 0.0, %v1615
        %v1617 = vpop.f32.mrb[0].mxu0
        %v1618 = vpop.f32.mrb[0].mxu0
        %v1619 = vadd.f32 0.0, %v1618
        %v1620 = vpop.f32.mrb[0].mxu0
        %1621 = vdwg.mxu0
        %1622 = vrot.lane.b32.xlu0 %v894, 64
        %v1623 = vpop.permute.xlu0 %1622
        %v1626 = vsel %vm1296, %v1476, 0
        %1628 = vmatprep.subr.bf16.mxu0 0
        %1629 = vmatpush1.bf16.msra.mxu0 %v1623
        %1630 = vmatprep.subr.bf16.mxu0 0
        %1631 = vmatpush1.bf16.msra.mxu0 0
        %1632 = vmatprep.subr.bf16.mxu0 0
        %1633 = vmatpush1.bf16.msra.mxu0 0
        %1634 = vmatprep.subr.bf16.mxu0 0
        %1635 = vmatpush1.bf16.msra.mxu0 0
        %1636 = vmatprep.subr.bf16.mxu0 0
        %1637 = vmatpush1.bf16.msra.mxu0 0
        %1638 = vmatprep.subr.bf16.mxu0 0
        %1639 = vmatpush1.bf16.msra.mxu0 0
        %1640 = vmatprep.subr.bf16.mxu0 0
        %1641 = vmatpush1.bf16.msra.mxu0 0
        %1642 = vmatprep.subr.bf16.mxu0 0
        %1643 = vmatpush1.bf16.msra.mxu0 0
        %1644 = vmatprep.subr.bf16.mxu0 0
        %1645 = vmatpush1.bf16.msra.mxu0 0
        %1646 = vmatprep.subr.bf16.mxu0 0
        %1647 = vmatpush1.bf16.msra.mxu0 0
        %1648 = vmatprep.subr.bf16.mxu0 0
        %1649 = vmatpush1.bf16.msra.mxu0 0
        %1650 = vmatprep.subr.bf16.mxu0 0
        %1651 = vmatpush1.bf16.msra.mxu0 0
        %1652 = vmatprep.subr.bf16.mxu0 0
        %1653 = vmatpush1.bf16.msra.mxu0 0
        %1654 = vmatprep.subr.bf16.mxu0 0
        %1655 = vmatpush1.bf16.msra.mxu0 0
        %1656 = vmatprep.subr.bf16.mxu0 0
        %1657 = vmatpush1.bf16.msra.mxu0 0
        %1658 = vmatprep.subr.bf16.mxu0 0
        %1659 = vmatpush1.bf16.msra.mxu0 0
        %1660 = vmatprep.mubr.bf16.mxu0 0
        %1661 = vmatmul.mubr.bf16.gmra.mrb[0].mxu0 %v1626
        %v1662 = vpop.f32.mrb[0].mxu0
        %v1663 = vadd.f32 0.0, %v1662
        %v1664 = vpop.f32.mrb[0].mxu0
        %v1665 = vpop.f32.mrb[0].mxu0
        %v1666 = vadd.f32 0.0, %v1665
        %v1667 = vpop.f32.mrb[0].mxu0
        %1668 = vdwg.mxu0
        %1669 = vrot.lane.b32.xlu0 %v896, 64
        %v1670 = vpop.permute.xlu0 %1669
        %v1673 = vsel %vm1296, %v1477, 0
        %1675 = vmatprep.subr.bf16.mxu0 0
        %1676 = vmatpush1.bf16.msra.mxu0 %v1670
        %1677 = vmatprep.subr.bf16.mxu0 0
        %1678 = vmatpush1.bf16.msra.mxu0 0
        %1679 = vmatprep.subr.bf16.mxu0 0
        %1680 = vmatpush1.bf16.msra.mxu0 0
        %1681 = vmatprep.subr.bf16.mxu0 0
        %1682 = vmatpush1.bf16.msra.mxu0 0
        %1683 = vmatprep.subr.bf16.mxu0 0
        %1684 = vmatpush1.bf16.msra.mxu0 0
        %1685 = vmatprep.subr.bf16.mxu0 0
        %1686 = vmatpush1.bf16.msra.mxu0 0
        %1687 = vmatprep.subr.bf16.mxu0 0
        %1688 = vmatpush1.bf16.msra.mxu0 0
        %1689 = vmatprep.subr.bf16.mxu0 0
        %1690 = vmatpush1.bf16.msra.mxu0 0
        %1691 = vmatprep.subr.bf16.mxu0 0
        %1692 = vmatpush1.bf16.msra.mxu0 0
        %1693 = vmatprep.subr.bf16.mxu0 0
        %1694 = vmatpush1.bf16.msra.mxu0 0
        %1695 = vmatprep.subr.bf16.mxu0 0
        %1696 = vmatpush1.bf16.msra.mxu0 0
        %1697 = vmatprep.subr.bf16.mxu0 0
        %1698 = vmatpush1.bf16.msra.mxu0 0
        %1699 = vmatprep.subr.bf16.mxu0 0
        %1700 = vmatpush1.bf16.msra.mxu0 0
        %1701 = vmatprep.subr.bf16.mxu0 0
        %1702 = vmatpush1.bf16.msra.mxu0 0
        %1703 = vmatprep.subr.bf16.mxu0 0
        %1704 = vmatpush1.bf16.msra.mxu0 0
        %1705 = vmatprep.subr.bf16.mxu0 0
        %1706 = vmatpush1.bf16.msra.mxu0 0
        %1707 = vmatprep.mubr.bf16.mxu0 0
        %1708 = vmatmul.mubr.bf16.gmra.mrb[0].mxu0 %v1673
        %v1709 = vpop.f32.mrb[0].mxu0
        %v1710 = vadd.f32 0.0, %v1709
        %v1711 = vpop.f32.mrb[0].mxu0
        %v1712 = vpop.f32.mrb[0].mxu0
        %v1713 = vadd.f32 0.0, %v1712
        %v1714 = vpop.f32.mrb[0].mxu0
        %1715 = vdwg.mxu0
        %1716 = vrot.lane.b32.xlu0 %v898, 64
        %v1717 = vpop.permute.xlu0 %1716
        %v1720 = vsel %vm1296, %v1478, 0
        %1722 = vmatprep.subr.bf16.mxu0 0
        %1723 = vmatpush1.bf16.msra.mxu0 %v1717
        %1724 = vmatprep.subr.bf16.mxu0 0
        %1725 = vmatpush1.bf16.msra.mxu0 0
        %1726 = vmatprep.subr.bf16.mxu0 0
        %1727 = vmatpush1.bf16.msra.mxu0 0
        %1728 = vmatprep.subr.bf16.mxu0 0
        %1729 = vmatpush1.bf16.msra.mxu0 0
        %1730 = vmatprep.subr.bf16.mxu0 0
        %1731 = vmatpush1.bf16.msra.mxu0 0
        %1732 = vmatprep.subr.bf16.mxu0 0
        %1733 = vmatpush1.bf16.msra.mxu0 0
        %1734 = vmatprep.subr.bf16.mxu0 0
        %1735 = vmatpush1.bf16.msra.mxu0 0
        %1736 = vmatprep.subr.bf16.mxu0 0
        %1737 = vmatpush1.bf16.msra.mxu0 0
        %1738 = vmatprep.subr.bf16.mxu0 0
        %1739 = vmatpush1.bf16.msra.mxu0 0
        %1740 = vmatprep.subr.bf16.mxu0 0
        %1741 = vmatpush1.bf16.msra.mxu0 0
        %1742 = vmatprep.subr.bf16.mxu0 0
        %1743 = vmatpush1.bf16.msra.mxu0 0
        %1744 = vmatprep.subr.bf16.mxu0 0
        %1745 = vmatpush1.bf16.msra.mxu0 0
        %1746 = vmatprep.subr.bf16.mxu0 0
        %1747 = vmatpush1.bf16.msra.mxu0 0
        %1748 = vmatprep.subr.bf16.mxu0 0
        %1749 = vmatpush1.bf16.msra.mxu0 0
        %1750 = vmatprep.subr.bf16.mxu0 0
        %1751 = vmatpush1.bf16.msra.mxu0 0
        %1752 = vmatprep.subr.bf16.mxu0 0
        %1753 = vmatpush1.bf16.msra.mxu0 0
        %1754 = vmatprep.mubr.bf16.mxu0 0
        %1755 = vmatmul.mubr.bf16.gmra.mrb[0].mxu0 %v1720
        %v1756 = vpop.f32.mrb[0].mxu0
        %v1757 = vadd.f32 0.0, %v1756
        %v1758 = vpop.f32.mrb[0].mxu0
        %v1759 = vpop.f32.mrb[0].mxu0
        %v1760 = vadd.f32 0.0, %v1759
        %v1761 = vpop.f32.mrb[0].mxu0
        %1762 = vdwg.mxu0
        %1763 = vrot.lane.b32.xlu0 %v900, 64
        %v1764 = vpop.permute.xlu0 %1763
        %v1767 = vsel %vm1296, %v1479, 0
        %1769 = vmatprep.subr.bf16.mxu0 0
        %1770 = vmatpush1.bf16.msra.mxu0 %v1764
        %1771 = vmatprep.subr.bf16.mxu0 0
        %1772 = vmatpush1.bf16.msra.mxu0 0
        %1773 = vmatprep.subr.bf16.mxu0 0
        %1774 = vmatpush1.bf16.msra.mxu0 0
        %1775 = vmatprep.subr.bf16.mxu0 0
        %1776 = vmatpush1.bf16.msra.mxu0 0
        %1777 = vmatprep.subr.bf16.mxu0 0
        %1778 = vmatpush1.bf16.msra.mxu0 0
        %1779 = vmatprep.subr.bf16.mxu0 0
        %1780 = vmatpush1.bf16.msra.mxu0 0
        %1781 = vmatprep.subr.bf16.mxu0 0
        %1782 = vmatpush1.bf16.msra.mxu0 0
        %1783 = vmatprep.subr.bf16.mxu0 0
        %1784 = vmatpush1.bf16.msra.mxu0 0
        %1785 = vmatprep.subr.bf16.mxu0 0
        %1786 = vmatpush1.bf16.msra.mxu0 0
        %1787 = vmatprep.subr.bf16.mxu0 0
        %1788 = vmatpush1.bf16.msra.mxu0 0
        %1789 = vmatprep.subr.bf16.mxu0 0
        %1790 = vmatpush1.bf16.msra.mxu0 0
        %1791 = vmatprep.subr.bf16.mxu0 0
        %1792 = vmatpush1.bf16.msra.mxu0 0
        %1793 = vmatprep.subr.bf16.mxu0 0
        %1794 = vmatpush1.bf16.msra.mxu0 0
        %1795 = vmatprep.subr.bf16.mxu0 0
        %1796 = vmatpush1.bf16.msra.mxu0 0
        %1797 = vmatprep.subr.bf16.mxu0 0
        %1798 = vmatpush1.bf16.msra.mxu0 0
        %1799 = vmatprep.subr.bf16.mxu0 0
        %1800 = vmatpush1.bf16.msra.mxu0 0
        %1801 = vmatprep.mubr.bf16.mxu0 0
        %1802 = vmatmul.mubr.bf16.gmra.mrb[0].mxu0 %v1767
        %v1803 = vpop.f32.mrb[0].mxu0
        %v1804 = vadd.f32 0.0, %v1803
        %v1805 = vpop.f32.mrb[0].mxu0
        %v1806 = vpop.f32.mrb[0].mxu0
        %v1807 = vadd.f32 0.0, %v1806
        %v1808 = vpop.f32.mrb[0].mxu0
        %1809 = vdwg.mxu0
        %1810 = vrot.lane.b32.xlu0 %v902, 64
        %v1811 = vpop.permute.xlu0 %1810
        %v1814 = vsel %vm1296, %v1480, 0
        %1816 = vmatprep.subr.bf16.mxu0 0
        %1817 = vmatpush1.bf16.msra.mxu0 %v1811
        %1818 = vmatprep.subr.bf16.mxu0 0
        %1819 = vmatpush1.bf16.msra.mxu0 0
        %1820 = vmatprep.subr.bf16.mxu0 0
        %1821 = vmatpush1.bf16.msra.mxu0 0
        %1822 = vmatprep.subr.bf16.mxu0 0
        %1823 = vmatpush1.bf16.msra.mxu0 0
        %1824 = vmatprep.subr.bf16.mxu0 0
        %1825 = vmatpush1.bf16.msra.mxu0 0
        %1826 = vmatprep.subr.bf16.mxu0 0
        %1827 = vmatpush1.bf16.msra.mxu0 0
        %1828 = vmatprep.subr.bf16.mxu0 0
        %1829 = vmatpush1.bf16.msra.mxu0 0
        %1830 = vmatprep.subr.bf16.mxu0 0
        %1831 = vmatpush1.bf16.msra.mxu0 0
        %1832 = vmatprep.subr.bf16.mxu0 0
        %1833 = vmatpush1.bf16.msra.mxu0 0
        %1834 = vmatprep.subr.bf16.mxu0 0
        %1835 = vmatpush1.bf16.msra.mxu0 0
        %1836 = vmatprep.subr.bf16.mxu0 0
        %1837 = vmatpush1.bf16.msra.mxu0 0
        %1838 = vmatprep.subr.bf16.mxu0 0
        %1839 = vmatpush1.bf16.msra.mxu0 0
        %1840 = vmatprep.subr.bf16.mxu0 0
        %1841 = vmatpush1.bf16.msra.mxu0 0
        %1842 = vmatprep.subr.bf16.mxu0 0
        %1843 = vmatpush1.bf16.msra.mxu0 0
        %1844 = vmatprep.subr.bf16.mxu0 0
        %1845 = vmatpush1.bf16.msra.mxu0 0
        %1846 = vmatprep.subr.bf16.mxu0 0
        %1847 = vmatpush1.bf16.msra.mxu0 0
        %1848 = vmatprep.mubr.bf16.mxu0 0
        %1849 = vmatmul.mubr.bf16.gmra.mrb[0].mxu0 %v1814
        %v1850 = vpop.f32.mrb[0].mxu0
        %v1851 = vadd.f32 0.0, %v1850
        %v1852 = vpop.f32.mrb[0].mxu0
        %v1853 = vpop.f32.mrb[0].mxu0
        %v1854 = vadd.f32 0.0, %v1853
        %v1855 = vpop.f32.mrb[0].mxu0
        %1856 = vdwg.mxu0
        %v1857 = vpack.c.bf16 %v1525, %v1522
        %v1858 = vpack.c.bf16 %v1572, %v1569
        %v1859 = vpack.c.bf16 %v1619, %v1616
        %v1860 = vpack.c.bf16 %v1666, %v1663
        %v1861 = vpack.c.bf16 %v1713, %v1710
        %v1862 = vpack.c.bf16 %v1760, %v1757
        %v1863 = vpack.c.bf16 %v1807, %v1804
        %v1864 = vpack.c.bf16 %v1854, %v1851
        %1867 = vrot.lane.b32.xlu0 %v1859, 8
        %v1868 = vpop.permute.xlu0 %1867
        %1869 = vrot.lane.b32.xlu0 %v1860, 8
        %v1870 = vpop.permute.xlu0 %1869
        %1873 = vrot.lane.b32.xlu0 %v1861, 16
        %v1874 = vpop.permute.xlu0 %1873
        %1875 = vrot.lane.b32.xlu0 %v1862, 16
        %v1876 = vpop.permute.xlu0 %1875
        %1879 = vrot.lane.b32.xlu0 %v1863, 24
        %v1880 = vpop.permute.xlu0 %1879
        %1881 = vrot.lane.b32.xlu0 %v1864, 24
        %v1882 = vpop.permute.xlu0 %1881
        %v1885 = vsel %vm905, %v1857, %v1868
        %v1888 = vsel %vm905, %v1858, %v1870
        %v1890 = vsel %vm1296, %v1885, %v1874
        %v1892 = vsel %vm1296, %v1888, %v1876
        %vm1893 = vcmask 195584
        %v1895 = vsel %vm1893, %v1890, %v1880
        %v1897 = vsel %vm1893, %v1892, %v1882
        %v1898 = vld [vmem:[%s607] sm:$0xf]
        %v1899 = vld [vmem:[%s607 + $0x4] sm:$0xf]
        %v1900 = vld [vmem:[%s607 + $0x8] sm:$0xf]
        %v1901 = vld [vmem:[%s607 + $0xc] sm:$0xf]
        %v1906 = vunpack.c.l.b16 %v1898
        %v1907 = vunpack.c.l.b16 %v1899
        %v1908 = vunpack.c.l.b16 %v1900
        %v1909 = vunpack.c.l.b16 %v1901
        %v1910 = vpack.c.b16 %v1907, %v1906
        %v1911 = vpack.c.b16 %v1909, %v1908
        %v1914 = vsel %vm753, %v1895, 0
        %v1916 = vsel %vm753, %v1897, 0
        %1918 = vmatprep.subr.bf16.mxu0 0
        %1919 = vmatpush1.bf16.msra.mxu0 %v1910
        %1920 = vmatprep.subr.bf16.mxu0 0
        %1921 = vmatpush1.bf16.msra.mxu0 %v1911
        %1922 = vmatprep.subr.bf16.mxu0 0
        %1923 = vmatpush1.bf16.msra.mxu0 0
        %1924 = vmatprep.subr.bf16.mxu0 0
        %1925 = vmatpush1.bf16.msra.mxu0 0
        %1926 = vmatprep.subr.bf16.mxu0 0
        %1927 = vmatpush1.bf16.msra.mxu0 0
        %1928 = vmatprep.subr.bf16.mxu0 0
        %1929 = vmatpush1.bf16.msra.mxu0 0
        %1930 = vmatprep.subr.bf16.mxu0 0
        %1931 = vmatpush1.bf16.msra.mxu0 0
        %1932 = vmatprep.subr.bf16.mxu0 0
        %1933 = vmatpush1.bf16.msra.mxu0 0
        %1934 = vmatprep.subr.bf16.mxu0 0
        %1935 = vmatpush1.bf16.msra.mxu0 0
        %1936 = vmatprep.subr.bf16.mxu0 0
        %1937 = vmatpush1.bf16.msra.mxu0 0
        %1938 = vmatprep.subr.bf16.mxu0 0
        %1939 = vmatpush1.bf16.msra.mxu0 0
        %1940 = vmatprep.subr.bf16.mxu0 0
        %1941 = vmatpush1.bf16.msra.mxu0 0
        %1942 = vmatprep.subr.bf16.mxu0 0
        %1943 = vmatpush1.bf16.msra.mxu0 0
        %1944 = vmatprep.subr.bf16.mxu0 0
        %1945 = vmatpush1.bf16.msra.mxu0 0
        %1946 = vmatprep.subr.bf16.mxu0 0
        %1947 = vmatpush1.bf16.msra.mxu0 0
        %1948 = vmatprep.subr.bf16.mxu0 0
        %1949 = vmatpush1.bf16.msra.mxu0 0
        %1950 = vmatprep.mubr.bf16.mxu0 0
        %1951 = vmatmul.mubr.bf16.gmra.mrb[0].mxu0 %v1914
        %v1952 = vpop.f32.mrb[0].mxu0
        %v1953 = vadd.f32 0.0, %v1952
        %v1954 = vpop.f32.mrb[0].mxu0
        %v1955 = vpop.f32.mrb[0].mxu0
        %v1956 = vadd.f32 0.0, %v1955
        %v1957 = vpop.f32.mrb[0].mxu0
        %1958 = vmatprep.mubr.bf16.mxu0 0
        %1959 = vmatmul.mubr.bf16.gmra.mrb[0].mxu0 %v1916
        %v1960 = vpop.f32.mrb[0].mxu0
        %v1961 = vadd.f32 0.0, %v1960
        %v1962 = vpop.f32.mrb[0].mxu0
        %v1963 = vpop.f32.mrb[0].mxu0
        %v1964 = vadd.f32 0.0, %v1963
        %v1965 = vpop.f32.mrb[0].mxu0
        %1966 = vdwg.mxu0
        %v1967 = vadd.f32 %v749, %v1953
        %v1968 = vadd.f32 %v750, %v1956
        %v1969 = vadd.f32 %v751, %v1961
        %v1970 = vadd.f32 %v752, %v1964
        %v1971 = vld [vmem:[%s610] sm:$0x1]
        %v1973 = vlaneseq
        %v1974 = vshrl.u32 %v1973, 7
        %v1975 = vsub.s32 0, %v1974
        %v1976 = vrot.slane %v1971, %v1975
        %v1978 = vadd.f32 %v1967, %v1976
        %v1979 = vadd.f32 %v1968, %v1976
        %v1980 = vadd.f32 %v1969, %v1976
        %v1981 = vadd.f32 %v1970, %v1976
        %v1982 = vsel %vm753, %v1978, 0.0
        %1983 = vadd.xlane.f32.xlu0 %v1982
        %v1984 = vpop.xlane.xlu0 %1983
        %v1985 = vsel %vm753, %v1979, 0.0
        %1986 = vadd.xlane.f32.xlu0 %v1985
        %v1987 = vpop.xlane.xlu0 %1986
        %v1988 = vsel %vm753, %v1980, 0.0
        %1989 = vadd.xlane.f32.xlu0 %v1988
        %v1990 = vpop.xlane.xlu0 %1989
        %v1991 = vsel %vm753, %v1981, 0.0
        %1992 = vadd.xlane.f32.xlu0 %v1991
        %v1993 = vpop.xlane.xlu0 %1992
        %v1994 = vmul.f32 %v1984, %v766
        %v1995 = vmul.f32 %v1987, %v766
        %v1996 = vmul.f32 %v1990, %v766
        %v1997 = vmul.f32 %v1993, %v766
        %v1998 = vsub.f32 %v1978, %v1994
        %v1999 = vsub.f32 %v1979, %v1995
        %v2000 = vsub.f32 %v1980, %v1996
        %v2001 = vsub.f32 %v1981, %v1997
        %v2002 = vmul.f32 %v1998, %v1998
        %v2003 = vmul.f32 %v1999, %v1999
        %v2004 = vmul.f32 %v2000, %v2000
        %v2005 = vmul.f32 %v2001, %v2001
        %v2006 = vsel %vm753, %v2002, 0.0
        %2007 = vadd.xlane.f32.xlu0 %v2006
        %v2008 = vpop.xlane.xlu0 %2007
        %v2009 = vsel %vm753, %v2003, 0.0
        %2010 = vadd.xlane.f32.xlu0 %v2009
        %v2011 = vpop.xlane.xlu0 %2010
        %v2012 = vsel %vm753, %v2004, 0.0
        %2013 = vadd.xlane.f32.xlu0 %v2012
        %v2014 = vpop.xlane.xlu0 %2013
        %v2015 = vsel %vm753, %v2005, 0.0
        %2016 = vadd.xlane.f32.xlu0 %v2015
        %v2017 = vpop.xlane.xlu0 %2016
        %v2018 = vmul.f32 %v2008, %v766
        %v2019 = vmul.f32 %v2011, %v766
        %v2020 = vmul.f32 %v2014, %v766
        %v2021 = vmul.f32 %v2017, %v766
        %v2022 = vadd.f32 %v2018, 1e-05
        %v2023 = vadd.f32 %v2019, 1e-05
        %v2024 = vadd.f32 %v2020, 1e-05
        %v2025 = vadd.f32 %v2021, 1e-05
        %v2026 = vrsqrt.pop %v2022
        %v2027 = vrsqrt.pop %v2023
        %v2028 = vrsqrt.pop %v2024
        %v2029 = vrsqrt.pop %v2025
        %v2030 = vmul.f32 %v1998, %v2026
        %v2031 = vmul.f32 %v1999, %v2027
        %v2032 = vmul.f32 %v2000, %v2028
        %v2033 = vmul.f32 %v2001, %v2029
        %v2034 = vpack.c.bf16 %v2031, %v2030
        %v2035 = vpack.c.bf16 %v2033, %v2032
        %v2036 = vld [vmem:[%s615] sm:$0xf]
        %v2037 = vld [vmem:[%s615 + $0x4] sm:$0xf]
        %v2038 = vld [vmem:[%s615 + $0x8] sm:$0xf]
        %v2039 = vld [vmem:[%s615 + $0xc] sm:$0xf]
        %v2040 = vld [vmem:[%s618] sm:$0x1]
        %v2042 = vlaneseq
        %v2043 = vshrl.u32 %v2042, 7
        %v2044 = vsub.s32 0, %v2043
        %v2045 = vrot.slane %v2040, %v2044
        %v2051 = vunpack.c.l.b16 %v2036
        %v2052 = vunpack.c.l.b16 %v2037
        %v2053 = vunpack.c.l.b16 %v2038
        %v2054 = vunpack.c.l.b16 %v2039
        %v2055 = vpack.c.b16 %v2052, %v2051
        %v2056 = vpack.c.b16 %v2054, %v2053
        %v2060 = vsel %vm753, %v2034, 0
        %v2063 = vsel %vm753, %v2035, 0
        %2065 = vmatprep.subr.bf16.mxu0 0
        %2066 = vmatpush1.bf16.msra.mxu0 %v2055
        %2067 = vmatprep.subr.bf16.mxu0 0
        %2068 = vmatpush1.bf16.msra.mxu0 %v2056
        %2069 = vmatprep.subr.bf16.mxu0 0
        %2070 = vmatpush1.bf16.msra.mxu0 0
        %2071 = vmatprep.subr.bf16.mxu0 0
        %2072 = vmatpush1.bf16.msra.mxu0 0
        %2073 = vmatprep.subr.bf16.mxu0 0
        %2074 = vmatpush1.bf16.msra.mxu0 0
        %2075 = vmatprep.subr.bf16.mxu0 0
        %2076 = vmatpush1.bf16.msra.mxu0 0
        %2077 = vmatprep.subr.bf16.mxu0 0
        %2078 = vmatpush1.bf16.msra.mxu0 0
        %2079 = vmatprep.subr.bf16.mxu0 0
        %2080 = vmatpush1.bf16.msra.mxu0 0
        %2081 = vmatprep.subr.bf16.mxu0 0
        %2082 = vmatpush1.bf16.msra.mxu0 0
        %2083 = vmatprep.subr.bf16.mxu0 0
        %2084 = vmatpush1.bf16.msra.mxu0 0
        %2085 = vmatprep.subr.bf16.mxu0 0
        %2086 = vmatpush1.bf16.msra.mxu0 0
        %2087 = vmatprep.subr.bf16.mxu0 0
        %2088 = vmatpush1.bf16.msra.mxu0 0
        %2089 = vmatprep.subr.bf16.mxu0 0
        %2090 = vmatpush1.bf16.msra.mxu0 0
        %2091 = vmatprep.subr.bf16.mxu0 0
        %2092 = vmatpush1.bf16.msra.mxu0 0
        %2093 = vmatprep.subr.bf16.mxu0 0
        %2094 = vmatpush1.bf16.msra.mxu0 0
        %2095 = vmatprep.subr.bf16.mxu0 0
        %2096 = vmatpush1.bf16.msra.mxu0 0
        %2097 = vmatprep.mubr.bf16.mxu0 0
        %2098 = vmatmul.mubr.bf16.gmra.mrb[0].mxu0 %v2060
        %v2099 = vpop.f32.mrb[0].mxu0
        %v2100 = vadd.f32 %v2045, %v2099
        %v2101 = vpop.f32.mrb[0].mxu0
        %v2102 = vpop.f32.mrb[0].mxu0
        %v2103 = vadd.f32 %v2045, %v2102
        %v2104 = vpop.f32.mrb[0].mxu0
        %2105 = vmatprep.mubr.bf16.mxu0 0
        %2106 = vmatmul.mubr.bf16.gmra.mrb[0].mxu0 %v2063
        %v2107 = vpop.f32.mrb[0].mxu0
        %v2108 = vadd.f32 %v2045, %v2107
        %v2109 = vpop.f32.mrb[0].mxu0
        %v2110 = vpop.f32.mrb[0].mxu0
        %v2111 = vadd.f32 %v2045, %v2110
        %v2112 = vpop.f32.mrb[0].mxu0
        %2113 = vdwg.mxu0
        %v2114 = vmul.f32 %v2100, 0.5
        %v2115 = vmul.f32 %v2103, 0.5
        %v2116 = vmul.f32 %v2108, 0.5
        %v2117 = vmul.f32 %v2111, 0.5
        %v2118 = vmul.f32 %v2100, 0.70710677
        %v2119 = vmul.f32 %v2103, 0.70710677
        %v2120 = vmul.f32 %v2108, 0.70710677
        %v2121 = vmul.f32 %v2111, 0.70710677
        %v2122 = verf.f32.pop %v2118
        %v2123 = verf.f32.pop %v2119
        %v2124 = verf.f32.pop %v2120
        %v2125 = verf.f32.pop %v2121
        %v2126 = vadd.f32 %v2122, 1.0
        %v2127 = vadd.f32 %v2123, 1.0
        %v2128 = vadd.f32 %v2124, 1.0
        %v2129 = vadd.f32 %v2125, 1.0
        %v2130 = vmul.f32 %v2114, %v2126
        %v2131 = vmul.f32 %v2115, %v2127
        %v2132 = vmul.f32 %v2116, %v2128
        %v2133 = vmul.f32 %v2117, %v2129
        %v2134 = vpack.c.bf16 %v2131, %v2130
        %v2135 = vpack.c.bf16 %v2133, %v2132
        %v2136 = vld [vmem:[%s623] sm:$0xf]
        %v2137 = vld [vmem:[%s623 + $0x4] sm:$0xf]
        %v2138 = vld [vmem:[%s623 + $0x8] sm:$0xf]
        %v2139 = vld [vmem:[%s623 + $0xc] sm:$0xf]
        %v2140 = vld [vmem:[%s623 + $0x10] sm:$0xf]
        %v2141 = vld [vmem:[%s623 + $0x14] sm:$0xf]
        %v2142 = vld [vmem:[%s623 + $0x18] sm:$0xf]
        %v2143 = vld [vmem:[%s623 + $0x1c] sm:$0xf]
        %v2144 = vld [vmem:[%s626] sm:$0x1]
        %v2146 = vlaneseq
        %v2147 = vshrl.u32 %v2146, 7
        %v2148 = vsub.s32 0, %v2147
        %v2149 = vrot.slane %v2144, %v2148
        %v2159 = vunpack.c.l.b16 %v2136
        %v2160 = vunpack.c.l.b16 %v2137
        %v2161 = vunpack.c.l.b16 %v2138
        %v2162 = vunpack.c.l.b16 %v2139
        %v2163 = vunpack.c.l.b16 %v2140
        %v2164 = vunpack.c.l.b16 %v2141
        %v2165 = vunpack.c.l.b16 %v2142
        %v2166 = vunpack.c.l.b16 %v2143
        %v2167 = vpack.c.b16 %v2160, %v2159
        %v2168 = vpack.c.b16 %v2162, %v2161
        %v2169 = vpack.c.b16 %v2164, %v2163
        %v2170 = vpack.c.b16 %v2166, %v2165
        %vm2175 = vcmask 523264
        %v2177 = vsel %vm2175, %v2134, 0
        %v2180 = vsel %vm2175, %v2135, 0
        %2182 = vmatprep.subr.bf16.mxu0 0
        %2183 = vmatpush1.bf16.msra.mxu0 %v2167
        %2184 = vmatprep.subr.bf16.mxu0 0
        %2185 = vmatpush1.bf16.msra.mxu0 %v2168
        %2186 = vmatprep.subr.bf16.mxu0 0
        %2187 = vmatpush1.bf16.msra.mxu0 %v2169
        %2188 = vmatprep.subr.bf16.mxu0 0
        %2189 = vmatpush1.bf16.msra.mxu0 %v2170
        %2190 = vmatprep.subr.bf16.mxu0 0
        %2191 = vmatpush1.bf16.msra.mxu0 0
        %2192 = vmatprep.subr.bf16.mxu0 0
        %2193 = vmatpush1.bf16.msra.mxu0 0
        %2194 = vmatprep.subr.bf16.mxu0 0
        %2195 = vmatpush1.bf16.msra.mxu0 0
        %2196 = vmatprep.subr.bf16.mxu0 0
        %2197 = vmatpush1.bf16.msra.mxu0 0
        %2198 = vmatprep.subr.bf16.mxu0 0
        %2199 = vmatpush1.bf16.msra.mxu0 0
        %2200 = vmatprep.subr.bf16.mxu0 0
        %2201 = vmatpush1.bf16.msra.mxu0 0
        %2202 = vmatprep.subr.bf16.mxu0 0
        %2203 = vmatpush1.bf16.msra.mxu0 0
        %2204 = vmatprep.subr.bf16.mxu0 0
        %2205 = vmatpush1.bf16.msra.mxu0 0
        %2206 = vmatprep.subr.bf16.mxu0 0
        %2207 = vmatpush1.bf16.msra.mxu0 0
        %2208 = vmatprep.subr.bf16.mxu0 0
        %2209 = vmatpush1.bf16.msra.mxu0 0
        %2210 = vmatprep.subr.bf16.mxu0 0
        %2211 = vmatpush1.bf16.msra.mxu0 0
        %2212 = vmatprep.subr.bf16.mxu0 0
        %2213 = vmatpush1.bf16.msra.mxu0 0
        %2214 = vmatprep.mubr.bf16.mxu0 0
        %2215 = vmatmul.mubr.bf16.gmra.mrb[0].mxu0 %v2177
        %v2216 = vpop.f32.mrb[0].mxu0
        %v2217 = vadd.f32 %v2149, %v2216
        %v2218 = vpop.f32.mrb[0].mxu0
        %v2219 = vpop.f32.mrb[0].mxu0
        %v2220 = vadd.f32 %v2149, %v2219
        %v2221 = vpop.f32.mrb[0].mxu0
        %2222 = vmatprep.mubr.bf16.mxu0 0
        %2223 = vmatmul.mubr.bf16.gmra.mrb[0].mxu0 %v2180
        %v2224 = vpop.f32.mrb[0].mxu0
        %v2225 = vadd.f32 %v2149, %v2224
        %v2226 = vpop.f32.mrb[0].mxu0
        %v2227 = vpop.f32.mrb[0].mxu0
        %v2228 = vadd.f32 %v2149, %v2227
        %v2229 = vpop.f32.mrb[0].mxu0
        %2230 = vdwg.mxu0
        %v2231 = vadd.f32 %v1978, %v2217
        %v2232 = vadd.f32 %v1979, %v2220
        %v2233 = vadd.f32 %v1980, %v2225
        %v2234 = vadd.f32 %v1981, %v2228
        %p2235 = scmp.lt.s32.totalorder %s32, 1
        // Predicated region
        $region85: #{tpu_custom_call.1} parent=75 // pred_check
          %p2236 = pneg %p2235
        $region86: #{tpu_custom_call.1} parent=75 // pred_check_branch
          %2238 = sbr.rel (%p2236) target = $region88
        $region87: #{tpu_custom_call.1} parent=75 // pred_region
          %2239 = vst.msk [vmem:[#allocation5] sm:$0xff] %vm753, %v2231
          %2240 = vst.msk [vmem:[#allocation5 + $0x8] sm:$0xff] %vm753, %v2232
          %2241 = vst.msk [vmem:[#allocation5 + $0x10] sm:$0xff] %vm753, %v2233
          %2242 = vst.msk [vmem:[#allocation5 + $0x18] sm:$0xff] %vm753, %v2234
        $region88: #{tpu_custom_call.1} parent=75 // pred_fallthru
          _
        %p2243 = scmp.eq.s32.totalorder %s32, 1
        // Predicated region
        $region89: #{tpu_custom_call.1} parent=75 // pred_check
          %p2244 = pneg %p2243
        $region90: #{tpu_custom_call.1} parent=75 // pred_check_branch
          %2246 = sbr.rel (%p2244) target = $region92
        $region91: #{tpu_custom_call.1} parent=75 // pred_region
          %v2247 = vsel %vm753, %v2231, 0.0
          %2248 = vadd.xlane.f32.xlu0 %v2247
          %v2249 = vpop.xlane.xlu0 %2248
          %v2250 = vsel %vm753, %v2232, 0.0
          %2251 = vadd.xlane.f32.xlu0 %v2250
          %v2252 = vpop.xlane.xlu0 %2251
          %v2253 = vsel %vm753, %v2233, 0.0
          %2254 = vadd.xlane.f32.xlu0 %v2253
          %v2255 = vpop.xlane.xlu0 %2254
          %v2256 = vsel %vm753, %v2234, 0.0
          %2257 = vadd.xlane.f32.xlu0 %v2256
          %v2258 = vpop.xlane.xlu0 %2257
          %v2259 = vmul.f32 %v2249, %v766
          %v2260 = vmul.f32 %v2252, %v766
          %v2261 = vmul.f32 %v2255, %v766
          %v2262 = vmul.f32 %v2258, %v766
          %v2263 = vsub.f32 %v2231, %v2259
          %v2264 = vsub.f32 %v2232, %v2260
          %v2265 = vsub.f32 %v2233, %v2261
          %v2266 = vsub.f32 %v2234, %v2262
          %v2267 = vmul.f32 %v2263, %v2263
          %v2268 = vmul.f32 %v2264, %v2264
          %v2269 = vmul.f32 %v2265, %v2265
          %v2270 = vmul.f32 %v2266, %v2266
          %v2271 = vsel %vm753, %v2267, 0.0
          %2272 = vadd.xlane.f32.xlu0 %v2271
          %v2273 = vpop.xlane.xlu0 %2272
          %v2274 = vsel %vm753, %v2268, 0.0
          %2275 = vadd.xlane.f32.xlu0 %v2274
          %v2276 = vpop.xlane.xlu0 %2275
          %v2277 = vsel %vm753, %v2269, 0.0
          %2278 = vadd.xlane.f32.xlu0 %v2277
          %v2279 = vpop.xlane.xlu0 %2278
          %v2280 = vsel %vm753, %v2270, 0.0
          %2281 = vadd.xlane.f32.xlu0 %v2280
          %v2282 = vpop.xlane.xlu0 %2281
          %v2283 = vmul.f32 %v2273, %v766
          %v2284 = vmul.f32 %v2276, %v766
          %v2285 = vmul.f32 %v2279, %v766
          %v2286 = vmul.f32 %v2282, %v766
          %v2287 = vadd.f32 %v2283, 1e-05
          %v2288 = vadd.f32 %v2284, 1e-05
          %v2289 = vadd.f32 %v2285, 1e-05
          %v2290 = vadd.f32 %v2286, 1e-05
          %v2291 = vrsqrt.pop %v2287
          %v2292 = vrsqrt.pop %v2288
          %v2293 = vrsqrt.pop %v2289
          %v2294 = vrsqrt.pop %v2290
          %v2295 = vmul.f32 %v2263, %v2291
          %v2296 = vmul.f32 %v2264, %v2292
          %v2297 = vmul.f32 %v2265, %v2293
          %v2298 = vmul.f32 %v2266, %v2294
          %v2299 = vld [vmem:[%s12] sm:$0x1]
          %v2301 = vlaneseq
          %v2302 = vshrl.u32 %v2301, 7
          %v2303 = vsub.s32 0, %v2302
          %v2304 = vrot.slane %v2299, %v2303
          %v2306 = vmul.f32 %v2295, %v2304
          %v2307 = vmul.f32 %v2296, %v2304
          %v2308 = vmul.f32 %v2297, %v2304
          %v2309 = vmul.f32 %v2298, %v2304
          %v2310 = vld [vmem:[%s13] sm:$0x1]
          %v2312 = vlaneseq
          %v2313 = vshrl.u32 %v2312, 7
          %v2314 = vsub.s32 0, %v2313
          %v2315 = vrot.slane %v2310, %v2314
          %v2317 = vadd.f32 %v2306, %v2315
          %v2318 = vadd.f32 %v2307, %v2315
          %v2319 = vadd.f32 %v2308, %v2315
          %v2320 = vadd.f32 %v2309, %v2315
          %2321 = vst.msk [vmem:[#allocation5] sm:$0xff] %vm753, %v2317
          %2322 = vst.msk [vmem:[#allocation5 + $0x8] sm:$0xff] %vm753, %v2318
          %2323 = vst.msk [vmem:[#allocation5 + $0x10] sm:$0xff] %vm753, %v2319
          %2324 = vst.msk [vmem:[#allocation5 + $0x18] sm:$0xff] %vm753, %v2320
        $region92: #{tpu_custom_call.1} parent=75 // pred_fallthru
          _
        // Predicated region
        $region93: #{tpu_custom_call.1} parent=75 // pred_check
          %p2325 = pneg %p396
        $region94: #{tpu_custom_call.1} parent=75 // pred_check_branch
          %2327 = sbr.rel (%p2325) target = $region96
        $region95: #{tpu_custom_call.1} parent=75 // pred_region
          %s2328 = smul.u32 2, %s31
          %s2330 = ssub.s32 512, 512
          %2331 = vsyncadd [#allocation4], %s2330
          %s2332 = smul.addr %s2328, 2
          %s2333 = smul.addr %s2332, 128
          %s2334 = scalar_lea.hbm %s14, %s2333
          %s2335 = sshll.u32 [#allocation5], 4
          %s2336 = int_to_ptr.vmem [resolvable:$true] %s2335
          %2341 = dma.vmem_to_hbm [thread:$0]  %s2336, 512, %s2334, [#allocation4], 128, 128, 8
        $region96: #{tpu_custom_call.1} parent=75 // pred_fallthru
          _
        // Predicated region
        $region97: #{tpu_custom_call.1} parent=75 // pred_check
          %p2342 = pneg %p396
        $region98: #{tpu_custom_call.1} parent=75 // pred_check_branch
          %2344 = sbr.rel (%p2342) target = $region100
        $region99: #{tpu_custom_call.1} parent=75 // pred_region
          %2345 = dma.done [#allocation4], 512
        $region100: #{tpu_custom_call.1} parent=75 // pred_fallthru
          _
      $region76: #{tpu_custom_call.1} parent=5 // pred_fallthru
        _
      %p2346 = scmp.le.s32.totalorder 2, %s22
      // Predicated region
      $region101: #{tpu_custom_call.1} parent=5 // pred_check
        %p2347 = pneg %p2346
      $region102: #{tpu_custom_call.1} parent=5 // pred_check_branch
        %2349 = sbr.rel (%p2347) target = $region104
      $region103: #{tpu_custom_call.1} parent=5 // pred_region
        %s2350 = ssub.s32 %s22, 2
      $region104: #{tpu_custom_call.1} parent=5 // pred_fallthru
        _
    $region6: #{tpu_custom_call.1} parent=1 // loop_footer
      %s26 = sadd.s32 1, %s22
    $region7: #{tpu_custom_call.1} parent=1 // loop_footer_branch
      %21 = sbr.rel target = $region3
    $region8: #{tpu_custom_call.1} parent=1 // loop_exit
      _
    %2351 = vsyncpa [#allocation3], 1
    %s2352 = scalar_lea.sflag [#allocation3], 1
    %2353 = vsyncpa %s2352, 1
    %2354 = vsyncpa [#allocation4], 1
    %s2355 = scalar_lea.sflag [#allocation4], 1
    %2356 = vsyncpa %s2355, 1

</llo_original>
